<compile_context>
chip_gen: v5e
topology: v5e:2x2
jax: 0.10.0
libtpu: 0.0.40
codegen_flags: <defaults>
</compile_context>

<pallas_src>
import functools

import jax
import jax.numpy as jnp
import numpy as np
from jax.experimental import pallas as pl
from jax.experimental.pallas import tpu as pltpu

LANE = 128          # TPU lane width: all channel/vocab axes are padded to this
NEG = -1e30         # logit bias for padded vocab columns (exp underflows to 0)


# ----------------------------------------------------------------------------
# Fused kernel: all encoder blocks + decoder + log_softmax.
# One grid step processes Bt batch elements (flattened to Bt*T matmul rows).
# ----------------------------------------------------------------------------
def _quartznet_kernel(x_ref, dw_ref, pw_ref, bi_ref, rpw_ref, wd_ref, bd_ref,
                      logp_ref, hp_ref, acc_ref, *, use_res, Ks, T, Bt, halo):
    P = T + 2 * halo                               # per-element haloed region length
    zeros_halo = jnp.zeros((halo, LANE), jnp.float32)

    # Stage the Bt elements into per-element haloed regions; zero the halos once.
    # All offsets (multiples of 8) give aligned sublane stores.
    for b in range(Bt):
        hp_ref[b * P:b * P + halo, :] = zeros_halo
        hp_ref[b * P + halo + T:(b + 1) * P, :] = zeros_halo
        hp_ref[b * P + halo:b * P + halo + T, :] = x_ref[b]

    h = None                                       # (Bt*T, LANE) activation, kept in vregs

    for blk, (res_flag, K) in enumerate(zip(use_res, Ks)):
        pad = K // 2
        base = halo - pad
        dw = dw_ref[blk]                           # (Kmax, LANE) f32, real taps at [0:K]

        # Depthwise "same" conv over time: per element, statically unrolled over the
        # real K taps only (no Kmax zero-tap work).
        for b in range(Bt):
            xpb = hp_ref[b * P:(b + 1) * P, :]     # (P, LANE) aligned slab load
            a = xpb[base:base + T, :] * dw[0, :]
            for k in range(1, K):
                a = a + xpb[base + k:base + k + T, :] * dw[k, :]
            acc_ref[b * T:(b + 1) * T, :] = a      # aligned store into the flat slab

        acc = acc_ref[...]                         # (Bt*T, LANE) - one big MXU operand

        # Pointwise 1x1 conv (MXU, bf16 operands, f32 accumulation). BN scale is folded
        # into pw; bi carries BN beta (+ residual beta for residual blocks).
        z = jnp.dot(acc.astype(jnp.bfloat16), pw_ref[blk],
                    preferred_element_type=jnp.float32) + bi_ref[blk]

        # Residual 1x1 conv (BN scale folded) on the block input, added before ReLU.
        # Static branch: non-residual blocks never touch these weights.
        if res_flag:
            z = z + jnp.dot(h.astype(jnp.bfloat16), rpw_ref[blk],
                            preferred_element_type=jnp.float32)

        h = jnp.maximum(z, 0.0)                    # (Bt*T, LANE)

        # Write the ReLU output straight back into the haloed scratch for the next
        # block's depthwise. Skipped on the last block (decoder reads `h` from vregs).
        if blk + 1 < len(use_res):
            for b in range(Bt):
                hp_ref[b * P + halo:b * P + halo + T, :] = h[b * T:(b + 1) * T, :]

    # Decoder 1x1 conv to the 128-padded vocab + log_softmax over classes.
    # Padded vocab columns carry a -1e30 bias -> exp() contributes 0, never wins argmax.
    logits = jnp.dot(h.astype(jnp.bfloat16), wd_ref[...],
                     preferred_element_type=jnp.float32) + bd_ref[...]
    m = jnp.max(logits, axis=-1, keepdims=True)
    s = logits - m
    lse = jnp.log(jnp.sum(jnp.exp(s), axis=-1, keepdims=True))
    logp = s - lse
    for b in range(Bt):
        logp_ref[b] = logp[b * T:(b + 1) * T, :]


def quartznet_forward(x_btc, packed, use_res, Ks, ncls, Bt=2):
    B, T, F = x_btc.shape
    assert T % 8 == 0, "time axis must be a multiple of 8 (sublane alignment)"
    assert F <= LANE
    assert B % Bt == 0
    assert not use_res[0], "first encoder block is non-residual in QuartzNet"
    NB = len(use_res)
    Kmax = max(Ks)
    halo = max(8, ((Kmax // 2 + 7) // 8) * 8)      # 8-row-aligned halo >= max pad

    # Input channels padded once to the lane width (zeros; harmless through the network).
    x_pad = jnp.zeros((B, T, LANE), jnp.float32).at[:, :, :F].set(x_btc)

    kern = functools.partial(_quartznet_kernel,
                             use_res=tuple(bool(f) for f in use_res),
                             Ks=tuple(int(k) for k in Ks), T=T, Bt=Bt, halo=halo)

    # Advisory cost estimate for the XLA scheduler.
    n_res = sum(bool(f) for f in use_res)
    n_mm = NB + n_res + 1
    sumK = sum(int(k) for k in Ks)
    flops = B * T * (2 * LANE * LANE * n_mm + 2 * sumK * LANE + 8 * LANE * NB)
    transcendentals = B * T * (LANE + 1)
    param_bytes = (4 * NB * Kmax * LANE            # depthwise f32
                   + 2 * 2 * NB * LANE * LANE      # pointwise + residual bf16
                   + 4 * NB * LANE                 # bias f32
                   + 2 * LANE * LANE + 4 * LANE)   # decoder
    bytes_accessed = 4 * 2 * B * T * LANE + param_bytes

    logp_pad = pl.pallas_call(
        kern,
        out_shape=jax.ShapeDtypeStruct((B, T, LANE), jnp.float32),
        grid=(B // Bt,),
        in_specs=[
            pl.BlockSpec((Bt, T, LANE), lambda g: (g, 0, 0)),          # x (Bt elements)
            pl.BlockSpec((NB, Kmax, LANE), lambda g: (0, 0, 0)),       # depthwise (f32)
            pl.BlockSpec((NB, LANE, LANE), lambda g: (0, 0, 0)),       # pointwise (bf16)
            pl.BlockSpec((NB, 1, LANE), lambda g: (0, 0, 0)),          # bias (f32)
            pl.BlockSpec((NB, LANE, LANE), lambda g: (0, 0, 0)),       # residual 1x1 (bf16)
            pl.BlockSpec((LANE, LANE), lambda g: (0, 0)),              # decoder W (bf16)
            pl.BlockSpec((1, LANE), lambda g: (0, 0)),                 # decoder bias (f32)
        ],
        out_specs=pl.BlockSpec((Bt, T, LANE), lambda g: (g, 0, 0)),
        scratch_shapes=[
            pltpu.VMEM((Bt * (T + 2 * halo), LANE), jnp.float32),      # haloed activations
            pltpu.VMEM((Bt * T, LANE), jnp.float32),                   # flat depthwise out
        ],
        compiler_params=pltpu.CompilerParams(
            dimension_semantics=("parallel",),
            # Tiny at toy size; re-derive per generation (<=48 MiB on v7x) at real sizes.
            vmem_limit_bytes=32 * 1024 * 1024),
        cost_estimate=pl.CostEstimate(flops=flops,
                                      transcendentals=transcendentals,
                                      bytes_accessed=bytes_accessed),
    )(x_pad, packed["dw"], packed["pw"], packed["bi"], packed["rpw"],
      packed["wd"], packed["bd"])

    # Greedy CTC decode, lane-dense in the wrapper (padded classes sit at ~-1e30).
    preds = jnp.argmax(logp_pad, axis=-1).astype(jnp.int32)
    log_probs = logp_pad[:, :, :ncls]
    return preds, log_probs


# ----------------------------------------------------------------------------
# Parameter init (deterministic, synthetic, unpadded) + packing to kernel layout
# ----------------------------------------------------------------------------
def init_params(key, F, C, ncls, block_cfg):
    enc_params = []
    for i, (K, use_res) in enumerate(block_cfg):
        cin = F if i == 0 else C
        key, k1, k2, k3, k4, k5, k6, k7 = jax.random.split(key, 8)
        dw = jax.random.normal(k1, (K, cin), jnp.float32) / np.sqrt(K)
        pw = jax.random.normal(k2, (cin, C), jnp.float32) / np.sqrt(cin)
        gamma = 1.0 + 0.1 * jax.random.normal(k3, (1, C), jnp.float32)
        beta = 0.1 * jax.random.normal(k4, (1, C), jnp.float32)
        scale = gamma / jnp.sqrt(1.0 + 1e-5)        # folded eval-mode BN (mean=0, var=1)
        bias = beta
        if use_res:                                 # Jasper-style residual: 1x1 conv + BN
            rpw = jax.random.normal(k5, (cin, C), jnp.float32) / np.sqrt(cin)
            rgamma = 1.0 + 0.1 * jax.random.normal(k6, (1, C), jnp.float32)
            rbeta = 0.1 * jax.random.normal(k7, (1, C), jnp.float32)
            res = (rpw, rgamma / jnp.sqrt(1.0 + 1e-5), rbeta)
        else:
            res = None
        enc_params.append((dw, pw, scale, bias, res))
    key, kd1, kd2 = jax.random.split(key, 3)
    W = jax.random.normal(kd1, (C, ncls), jnp.float32) / np.sqrt(C)
    b = 0.01 * jax.random.normal(kd2, (1, ncls), jnp.float32)
    return enc_params, (W, b)


def pack_params(enc_params, dec_params):
    """Fold BN into the 1x1 weights/bias, pad channels/vocab to 128 lanes, cast matmul
    weights to bf16, and stack per-block tensors."""
    Ks = tuple(int(dw.shape[0]) for dw, _, _, _, _ in enc_params)
    Kmax = max(Ks)
    assert all(k % 2 == 1 for k in Ks), "Quartznet uses odd kernel widths"

    dw_l, pw_l, bi_l, rpw_l, flags = [], [], [], [], []
    for dw, pw, scale, bias, res in enc_params:
        K, cin = dw.shape
        cout = pw.shape[1]
        assert cin <= LANE and cout <= LANE
        # Real taps packed at [0:K]; per-block K is passed statically to the kernel.
        dw_l.append(jnp.zeros((Kmax, LANE), jnp.float32).at[:K, :cin].set(dw))
        pw_fold = pw * scale                       # fold BN scale into weight columns
        pw_l.append(jnp.zeros((LANE, LANE), jnp.float32)
                    .at[:cin, :cout].set(pw_fold).astype(jnp.bfloat16))
        b_tot = bias
        if res is not None:
            rpw, rsc, rbi = res
            rpw_l.append(jnp.zeros((LANE, LANE), jnp.float32)
                         .at[:cin, :cout].set(rpw * rsc).astype(jnp.bfloat16))
            b_tot = b_tot + rbi                    # fold residual BN beta into main bias
        else:                                      # placeholder; statically skipped
            rpw_l.append(jnp.zeros((LANE, LANE), jnp.bfloat16))
        bi_l.append(jnp.zeros((1, LANE), jnp.float32).at[:, :cout].set(b_tot))
        flags.append(res is not None)

    W, b = dec_params
    C, ncls = W.shape
    assert C <= LANE and ncls <= LANE
    wd = jnp.zeros((LANE, LANE), jnp.float32).at[:C, :ncls].set(W).astype(jnp.bfloat16)
    bd = jnp.full((1, LANE), NEG, jnp.float32).at[:, :ncls].set(b)

    packed = dict(dw=jnp.stack(dw_l), pw=jnp.stack(pw_l), bi=jnp.stack(bi_l),
                  rpw=jnp.stack(rpw_l), wd=wd, bd=bd)
    return packed, tuple(flags), Ks


# ----------------------------------------------------------------------------
# Pure-JAX reference (unpadded, same bf16-operand / folded-BN math) for verification
# ----------------------------------------------------------------------------
def reference_forward(x_btc, enc_params, dec_params):
    bf16 = jnp.bfloat16
    h = x_btc
    for (dw, pw, scale, bias, res) in enc_params:
        K = dw.shape[0]
        T = h.shape[1]
        pad = K // 2
        xpad = jnp.pad(h, ((0, 0), (pad, K - 1 - pad), (0, 0)))
        acc = xpad[:, 0:T, :] * dw[0, :]
        for k in range(1, K):
            acc = acc + xpad[:, k:k + T, :] * dw[k, :]
        w = (pw * scale).astype(bf16)
        z = jnp.dot(acc.astype(bf16), w, preferred_element_type=jnp.float32) + bias
        if res is not None:
            rpw, rsc, rbi = res
            rw = (rpw * rsc).astype(bf16)
            z = z + jnp.dot(h.astype(bf16), rw, preferred_element_type=jnp.float32) + rbi
        h = jnp.maximum(z, 0.0)
    W, b = dec_params
    logits = jnp.dot(h.astype(bf16), W.astype(bf16),
                     preferred_element_type=jnp.float32) + b
    logp = jax.nn.log_softmax(logits, axis=-1)
    return jnp.argmax(logp, axis=-1).astype(jnp.int32), logp


if __name__ == "__main__":
    B, F, T = 4, 32, 16          # batch, input feature channels, time frames
    C, NCLS = 32, 29             # encoder hidden channels, CTC vocab size
    block_cfg = [(7, False), (5, True), (7, True)]   # (kernel_width, use_residual)

    key = jax.random.PRNGKey(0)
    key, kx = jax.random.split(key)
    # PyTorch-style NCW input (B, F, T), transposed to the kernel layout (B, T, F)
    x_nct = jax.random.normal(kx, (B, F, T), jnp.float32)
    x_btc = jnp.transpose(x_nct, (0, 2, 1))

    enc_params, dec_params = init_params(key, F, C, NCLS, block_cfg)
    packed, use_res_flags, Ks = pack_params(enc_params, dec_params)

    preds, log_probs = quartznet_forward(x_btc, packed, use_res_flags, Ks, NCLS, Bt=2)
    preds = jax.block_until_ready(preds)
    log_probs = jax.block_until_ready(log_probs)

    ref_preds, ref_logp = reference_forward(x_btc, enc_params, dec_params)
    np.testing.assert_allclose(np.asarray(log_probs), np.asarray(ref_logp),
                               rtol=1e-3, atol=1e-3)
    np.testing.assert_array_equal(np.asarray(preds), np.asarray(ref_preds))

    print("KERNEL_OK")
</pallas_src>

<mosaic_0001>
module attributes {stable_mosaic.version = 11 : i64} {
  func.func @_quartznet_kernel(%arg0: i32, %arg1: memref<2x16x128xf32, #tpu.memory_space<vmem>>, %arg2: memref<3x7x128xf32, #tpu.memory_space<vmem>>, %arg3: memref<3x128x128xbf16, #tpu.memory_space<vmem>>, %arg4: memref<3x1x128xf32, #tpu.memory_space<vmem>>, %arg5: memref<3x128x128xbf16, #tpu.memory_space<vmem>>, %arg6: memref<128x128xbf16, #tpu.memory_space<vmem>>, %arg7: memref<1x128xf32, #tpu.memory_space<vmem>>, %arg8: memref<2x16x128xf32, #tpu.memory_space<vmem>>, %arg9: memref<64x128xf32, #tpu.memory_space<vmem>>, %arg10: memref<32x128xf32, #tpu.memory_space<vmem>>) attributes {dimension_semantics = [#tpu.dimension_semantics<parallel>], iteration_bounds = array<i64: 2>, scalar_prefetch = 0 : i64, scratch_operands = 2 : i64, tpu.core_type = #tpu.core_type<tc>, window_params = [{transform_indices = @transform_0, window_bounds = array<i64: 2, 16, 128>}, {pipeline_mode = #tpu.pipeline_mode<synchronous>, transform_indices = @transform_1, window_bounds = array<i64: 3, 7, 128>}, {pipeline_mode = #tpu.pipeline_mode<synchronous>, transform_indices = @transform_2, window_bounds = array<i64: 3, 128, 128>}, {pipeline_mode = #tpu.pipeline_mode<synchronous>, transform_indices = @transform_3, window_bounds = array<i64: 3, 1, 128>}, {pipeline_mode = #tpu.pipeline_mode<synchronous>, transform_indices = @transform_4, window_bounds = array<i64: 3, 128, 128>}, {pipeline_mode = #tpu.pipeline_mode<synchronous>, transform_indices = @transform_5, window_bounds = array<i64: 128, 128>}, {pipeline_mode = #tpu.pipeline_mode<synchronous>, transform_indices = @transform_6, window_bounds = array<i64: 1, 128>}, {transform_indices = @transform_7, window_bounds = array<i64: 2, 16, 128>}]} {
    %cst = arith.constant 0.000000e+00 : f32
    %0 = vector.broadcast %cst : f32 to vector<8x128xf32>
    %c0 = arith.constant 0 : index
    %c0_0 = arith.constant 0 : index
    %1 = vector.load %arg9[%c0, %c0_0] : memref<64x128xf32, #tpu.memory_space<vmem>>, vector<8x128xf32>
    tpu.vector_store %arg9[%c0, %c0_0], %0 {strides = array<i32>} : memref<64x128xf32, #tpu.memory_space<vmem>>, vector<8x128xf32>,
    %c24 = arith.constant 24 : index
    %c0_1 = arith.constant 0 : index
    %2 = vector.load %arg9[%c24, %c0_1] : memref<64x128xf32, #tpu.memory_space<vmem>>, vector<8x128xf32>
    tpu.vector_store %arg9[%c24, %c0_1], %0 {strides = array<i32>} : memref<64x128xf32, #tpu.memory_space<vmem>>, vector<8x128xf32>,
    %c0_2 = arith.constant 0 : index
    %c0_3 = arith.constant 0 : index
    %c0_4 = arith.constant 0 : index
    %3 = vector.load %arg1[%c0_2, %c0_3, %c0_4] : memref<2x16x128xf32, #tpu.memory_space<vmem>>, vector<1x16x128xf32>
    %4 = vector.shape_cast %3 : vector<1x16x128xf32> to vector<16x128xf32>
    %c8 = arith.constant 8 : index
    %c0_5 = arith.constant 0 : index
    %5 = vector.load %arg9[%c8, %c0_5] : memref<64x128xf32, #tpu.memory_space<vmem>>, vector<16x128xf32>
    tpu.vector_store %arg9[%c8, %c0_5], %4 {strides = array<i32>} : memref<64x128xf32, #tpu.memory_space<vmem>>, vector<16x128xf32>,
    %c32 = arith.constant 32 : index
    %c0_6 = arith.constant 0 : index
    %6 = vector.load %arg9[%c32, %c0_6] : memref<64x128xf32, #tpu.memory_space<vmem>>, vector<8x128xf32>
    tpu.vector_store %arg9[%c32, %c0_6], %0 {strides = array<i32>} : memref<64x128xf32, #tpu.memory_space<vmem>>, vector<8x128xf32>,
    %c56 = arith.constant 56 : index
    %c0_7 = arith.constant 0 : index
    %7 = vector.load %arg9[%c56, %c0_7] : memref<64x128xf32, #tpu.memory_space<vmem>>, vector<8x128xf32>
    tpu.vector_store %arg9[%c56, %c0_7], %0 {strides = array<i32>} : memref<64x128xf32, #tpu.memory_space<vmem>>, vector<8x128xf32>,
    %c1 = arith.constant 1 : index
    %c0_8 = arith.constant 0 : index
    %c0_9 = arith.constant 0 : index
    %8 = vector.load %arg1[%c1, %c0_8, %c0_9] : memref<2x16x128xf32, #tpu.memory_space<vmem>>, vector<1x16x128xf32>
    %9 = vector.shape_cast %8 : vector<1x16x128xf32> to vector<16x128xf32>
    %c40 = arith.constant 40 : index
    %c0_10 = arith.constant 0 : index
    %10 = vector.load %arg9[%c40, %c0_10] : memref<64x128xf32, #tpu.memory_space<vmem>>, vector<16x128xf32>
    tpu.vector_store %arg9[%c40, %c0_10], %9 {strides = array<i32>} : memref<64x128xf32, #tpu.memory_space<vmem>>, vector<16x128xf32>,
    %c0_11 = arith.constant 0 : index
    %c0_12 = arith.constant 0 : index
    %c0_13 = arith.constant 0 : index
    %11 = vector.load %arg2[%c0_11, %c0_12, %c0_13] : memref<3x7x128xf32, #tpu.memory_space<vmem>>, vector<1x7x128xf32>
    %12 = vector.shape_cast %11 : vector<1x7x128xf32> to vector<7x128xf32>
    %c0_14 = arith.constant 0 : index
    %c0_15 = arith.constant 0 : index
    %13 = vector.load %arg9[%c0_14, %c0_15] : memref<64x128xf32, #tpu.memory_space<vmem>>, vector<32x128xf32>
    %14 = vector.extract_strided_slice %13 {offsets = [5, 0], sizes = [16, 128], strides = [1, 1]} : vector<32x128xf32> to vector<16x128xf32>
    %15 = vector.extract_strided_slice %12 {offsets = [0, 0], sizes = [1, 128], strides = [1, 1]} : vector<7x128xf32> to vector<1x128xf32>
    %16 = vector.shape_cast %15 : vector<1x128xf32> to vector<128xf32>
    %17 = vector.shape_cast %16 : vector<128xf32> to vector<1x128xf32>
    %18 = vector.broadcast %17 : vector<1x128xf32> to vector<16x128xf32>
    %19 = arith.mulf %14, %18 : vector<16x128xf32>
    %20 = vector.extract_strided_slice %13 {offsets = [6, 0], sizes = [16, 128], strides = [1, 1]} : vector<32x128xf32> to vector<16x128xf32>
    %21 = vector.extract_strided_slice %12 {offsets = [1, 0], sizes = [1, 128], strides = [1, 1]} : vector<7x128xf32> to vector<1x128xf32>
    %22 = vector.shape_cast %21 : vector<1x128xf32> to vector<128xf32>
    %23 = vector.shape_cast %22 : vector<128xf32> to vector<1x128xf32>
    %24 = vector.broadcast %23 : vector<1x128xf32> to vector<16x128xf32>
    %25 = arith.mulf %20, %24 : vector<16x128xf32>
    %26 = arith.addf %19, %25 : vector<16x128xf32>
    %27 = vector.extract_strided_slice %13 {offsets = [7, 0], sizes = [16, 128], strides = [1, 1]} : vector<32x128xf32> to vector<16x128xf32>
    %28 = vector.extract_strided_slice %12 {offsets = [2, 0], sizes = [1, 128], strides = [1, 1]} : vector<7x128xf32> to vector<1x128xf32>
    %29 = vector.shape_cast %28 : vector<1x128xf32> to vector<128xf32>
    %30 = vector.shape_cast %29 : vector<128xf32> to vector<1x128xf32>
    %31 = vector.broadcast %30 : vector<1x128xf32> to vector<16x128xf32>
    %32 = arith.mulf %27, %31 : vector<16x128xf32>
    %33 = arith.addf %26, %32 : vector<16x128xf32>
    %34 = vector.extract_strided_slice %13 {offsets = [8, 0], sizes = [16, 128], strides = [1, 1]} : vector<32x128xf32> to vector<16x128xf32>
    %35 = vector.extract_strided_slice %12 {offsets = [3, 0], sizes = [1, 128], strides = [1, 1]} : vector<7x128xf32> to vector<1x128xf32>
    %36 = vector.shape_cast %35 : vector<1x128xf32> to vector<128xf32>
    %37 = vector.shape_cast %36 : vector<128xf32> to vector<1x128xf32>
    %38 = vector.broadcast %37 : vector<1x128xf32> to vector<16x128xf32>
    %39 = arith.mulf %34, %38 : vector<16x128xf32>
    %40 = arith.addf %33, %39 : vector<16x128xf32>
    %41 = vector.extract_strided_slice %13 {offsets = [9, 0], sizes = [16, 128], strides = [1, 1]} : vector<32x128xf32> to vector<16x128xf32>
    %42 = vector.extract_strided_slice %12 {offsets = [4, 0], sizes = [1, 128], strides = [1, 1]} : vector<7x128xf32> to vector<1x128xf32>
    %43 = vector.shape_cast %42 : vector<1x128xf32> to vector<128xf32>
    %44 = vector.shape_cast %43 : vector<128xf32> to vector<1x128xf32>
    %45 = vector.broadcast %44 : vector<1x128xf32> to vector<16x128xf32>
    %46 = arith.mulf %41, %45 : vector<16x128xf32>
    %47 = arith.addf %40, %46 : vector<16x128xf32>
    %48 = vector.extract_strided_slice %13 {offsets = [10, 0], sizes = [16, 128], strides = [1, 1]} : vector<32x128xf32> to vector<16x128xf32>
    %49 = vector.extract_strided_slice %12 {offsets = [5, 0], sizes = [1, 128], strides = [1, 1]} : vector<7x128xf32> to vector<1x128xf32>
    %50 = vector.shape_cast %49 : vector<1x128xf32> to vector<128xf32>
    %51 = vector.shape_cast %50 : vector<128xf32> to vector<1x128xf32>
    %52 = vector.broadcast %51 : vector<1x128xf32> to vector<16x128xf32>
    %53 = arith.mulf %48, %52 : vector<16x128xf32>
    %54 = arith.addf %47, %53 : vector<16x128xf32>
    %55 = vector.extract_strided_slice %13 {offsets = [11, 0], sizes = [16, 128], strides = [1, 1]} : vector<32x128xf32> to vector<16x128xf32>
    %56 = vector.extract_strided_slice %12 {offsets = [6, 0], sizes = [1, 128], strides = [1, 1]} : vector<7x128xf32> to vector<1x128xf32>
    %57 = vector.shape_cast %56 : vector<1x128xf32> to vector<128xf32>
    %58 = vector.shape_cast %57 : vector<128xf32> to vector<1x128xf32>
    %59 = vector.broadcast %58 : vector<1x128xf32> to vector<16x128xf32>
    %60 = arith.mulf %55, %59 : vector<16x128xf32>
    %61 = arith.addf %54, %60 : vector<16x128xf32>
    %c0_16 = arith.constant 0 : index
    %c0_17 = arith.constant 0 : index
    %62 = vector.load %arg10[%c0_16, %c0_17] : memref<32x128xf32, #tpu.memory_space<vmem>>, vector<16x128xf32>
    tpu.vector_store %arg10[%c0_16, %c0_17], %61 {strides = array<i32>} : memref<32x128xf32, #tpu.memory_space<vmem>>, vector<16x128xf32>,
    %c32_18 = arith.constant 32 : index
    %c0_19 = arith.constant 0 : index
    %63 = vector.load %arg9[%c32_18, %c0_19] : memref<64x128xf32, #tpu.memory_space<vmem>>, vector<32x128xf32>
    %64 = vector.extract_strided_slice %63 {offsets = [5, 0], sizes = [16, 128], strides = [1, 1]} : vector<32x128xf32> to vector<16x128xf32>
    %65 = vector.extract_strided_slice %12 {offsets = [0, 0], sizes = [1, 128], strides = [1, 1]} : vector<7x128xf32> to vector<1x128xf32>
    %66 = vector.shape_cast %65 : vector<1x128xf32> to vector<128xf32>
    %67 = vector.shape_cast %66 : vector<128xf32> to vector<1x128xf32>
    %68 = vector.broadcast %67 : vector<1x128xf32> to vector<16x128xf32>
    %69 = arith.mulf %64, %68 : vector<16x128xf32>
    %70 = vector.extract_strided_slice %63 {offsets = [6, 0], sizes = [16, 128], strides = [1, 1]} : vector<32x128xf32> to vector<16x128xf32>
    %71 = vector.extract_strided_slice %12 {offsets = [1, 0], sizes = [1, 128], strides = [1, 1]} : vector<7x128xf32> to vector<1x128xf32>
    %72 = vector.shape_cast %71 : vector<1x128xf32> to vector<128xf32>
    %73 = vector.shape_cast %72 : vector<128xf32> to vector<1x128xf32>
    %74 = vector.broadcast %73 : vector<1x128xf32> to vector<16x128xf32>
    %75 = arith.mulf %70, %74 : vector<16x128xf32>
    %76 = arith.addf %69, %75 : vector<16x128xf32>
    %77 = vector.extract_strided_slice %63 {offsets = [7, 0], sizes = [16, 128], strides = [1, 1]} : vector<32x128xf32> to vector<16x128xf32>
    %78 = vector.extract_strided_slice %12 {offsets = [2, 0], sizes = [1, 128], strides = [1, 1]} : vector<7x128xf32> to vector<1x128xf32>
    %79 = vector.shape_cast %78 : vector<1x128xf32> to vector<128xf32>
    %80 = vector.shape_cast %79 : vector<128xf32> to vector<1x128xf32>
    %81 = vector.broadcast %80 : vector<1x128xf32> to vector<16x128xf32>
    %82 = arith.mulf %77, %81 : vector<16x128xf32>
    %83 = arith.addf %76, %82 : vector<16x128xf32>
    %84 = vector.extract_strided_slice %63 {offsets = [8, 0], sizes = [16, 128], strides = [1, 1]} : vector<32x128xf32> to vector<16x128xf32>
    %85 = vector.extract_strided_slice %12 {offsets = [3, 0], sizes = [1, 128], strides = [1, 1]} : vector<7x128xf32> to vector<1x128xf32>
    %86 = vector.shape_cast %85 : vector<1x128xf32> to vector<128xf32>
    %87 = vector.shape_cast %86 : vector<128xf32> to vector<1x128xf32>
    %88 = vector.broadcast %87 : vector<1x128xf32> to vector<16x128xf32>
    %89 = arith.mulf %84, %88 : vector<16x128xf32>
    %90 = arith.addf %83, %89 : vector<16x128xf32>
    %91 = vector.extract_strided_slice %63 {offsets = [9, 0], sizes = [16, 128], strides = [1, 1]} : vector<32x128xf32> to vector<16x128xf32>
    %92 = vector.extract_strided_slice %12 {offsets = [4, 0], sizes = [1, 128], strides = [1, 1]} : vector<7x128xf32> to vector<1x128xf32>
    %93 = vector.shape_cast %92 : vector<1x128xf32> to vector<128xf32>
    %94 = vector.shape_cast %93 : vector<128xf32> to vector<1x128xf32>
    %95 = vector.broadcast %94 : vector<1x128xf32> to vector<16x128xf32>
    %96 = arith.mulf %91, %95 : vector<16x128xf32>
    %97 = arith.addf %90, %96 : vector<16x128xf32>
    %98 = vector.extract_strided_slice %63 {offsets = [10, 0], sizes = [16, 128], strides = [1, 1]} : vector<32x128xf32> to vector<16x128xf32>
    %99 = vector.extract_strided_slice %12 {offsets = [5, 0], sizes = [1, 128], strides = [1, 1]} : vector<7x128xf32> to vector<1x128xf32>
    %100 = vector.shape_cast %99 : vector<1x128xf32> to vector<128xf32>
    %101 = vector.shape_cast %100 : vector<128xf32> to vector<1x128xf32>
    %102 = vector.broadcast %101 : vector<1x128xf32> to vector<16x128xf32>
    %103 = arith.mulf %98, %102 : vector<16x128xf32>
    %104 = arith.addf %97, %103 : vector<16x128xf32>
    %105 = vector.extract_strided_slice %63 {offsets = [11, 0], sizes = [16, 128], strides = [1, 1]} : vector<32x128xf32> to vector<16x128xf32>
    %106 = vector.extract_strided_slice %12 {offsets = [6, 0], sizes = [1, 128], strides = [1, 1]} : vector<7x128xf32> to vector<1x128xf32>
    %107 = vector.shape_cast %106 : vector<1x128xf32> to vector<128xf32>
    %108 = vector.shape_cast %107 : vector<128xf32> to vector<1x128xf32>
    %109 = vector.broadcast %108 : vector<1x128xf32> to vector<16x128xf32>
    %110 = arith.mulf %105, %109 : vector<16x128xf32>
    %111 = arith.addf %104, %110 : vector<16x128xf32>
    %c16 = arith.constant 16 : index
    %c0_20 = arith.constant 0 : index
    %112 = vector.load %arg10[%c16, %c0_20] : memref<32x128xf32, #tpu.memory_space<vmem>>, vector<16x128xf32>
    tpu.vector_store %arg10[%c16, %c0_20], %111 {strides = array<i32>} : memref<32x128xf32, #tpu.memory_space<vmem>>, vector<16x128xf32>,
    %c0_21 = arith.constant 0 : index
    %c0_22 = arith.constant 0 : index
    %113 = vector.load %arg10[%c0_21, %c0_22] : memref<32x128xf32, #tpu.memory_space<vmem>>, vector<32x128xf32>
    %114 = arith.truncf %113 : vector<32x128xf32> to vector<32x128xbf16>
    %c0_23 = arith.constant 0 : index
    %c0_24 = arith.constant 0 : index
    %c0_25 = arith.constant 0 : index
    %115 = vector.load %arg3[%c0_23, %c0_24, %c0_25] : memref<3x128x128xbf16, #tpu.memory_space<vmem>>, vector<1x128x128xbf16>
    %116 = vector.shape_cast %115 : vector<1x128x128xbf16> to vector<128x128xbf16>
    %cst_26 = arith.constant dense<0.000000e+00> : vector<32x128xf32>
    %117 = tpu.matmul %114, %116, %cst_26 {dimension_numbers = #tpu.dot_dimension_numbers<[1], [0], [0], [1], [0, 0, 1, 1], [], []>} : vector<32x128xbf16>, vector<128x128xbf16>, vector<32x128xf32> -> vector<32x128xf32>
    %c0_27 = arith.constant 0 : index
    %c0_28 = arith.constant 0 : index
    %c0_29 = arith.constant 0 : index
    %118 = vector.load %arg4[%c0_27, %c0_28, %c0_29] : memref<3x1x128xf32, #tpu.memory_space<vmem>>, vector<1x1x128xf32>
    %119 = vector.shape_cast %118 : vector<1x1x128xf32> to vector<1x128xf32>
    %120 = vector.broadcast %119 : vector<1x128xf32> to vector<32x128xf32>
    %121 = arith.addf %117, %120 : vector<32x128xf32>
    %cst_30 = arith.constant 0.000000e+00 : f32
    %122 = vector.broadcast %cst_30 : f32 to vector<32x128xf32>
    %123 = arith.maximumf %121, %122 : vector<32x128xf32>
    %124 = vector.extract_strided_slice %123 {offsets = [0, 0], sizes = [16, 128], strides = [1, 1]} : vector<32x128xf32> to vector<16x128xf32>
    %c8_31 = arith.constant 8 : index
    %c0_32 = arith.constant 0 : index
    %125 = vector.load %arg9[%c8_31, %c0_32] : memref<64x128xf32, #tpu.memory_space<vmem>>, vector<16x128xf32>
    tpu.vector_store %arg9[%c8_31, %c0_32], %124 {strides = array<i32>} : memref<64x128xf32, #tpu.memory_space<vmem>>, vector<16x128xf32>,
    %126 = vector.extract_strided_slice %123 {offsets = [16, 0], sizes = [16, 128], strides = [1, 1]} : vector<32x128xf32> to vector<16x128xf32>
    %c40_33 = arith.constant 40 : index
    %c0_34 = arith.constant 0 : index
    %127 = vector.load %arg9[%c40_33, %c0_34] : memref<64x128xf32, #tpu.memory_space<vmem>>, vector<16x128xf32>
    tpu.vector_store %arg9[%c40_33, %c0_34], %126 {strides = array<i32>} : memref<64x128xf32, #tpu.memory_space<vmem>>, vector<16x128xf32>,
    %c1_35 = arith.constant 1 : index
    %c0_36 = arith.constant 0 : index
    %c0_37 = arith.constant 0 : index
    %128 = vector.load %arg2[%c1_35, %c0_36, %c0_37] : memref<3x7x128xf32, #tpu.memory_space<vmem>>, vector<1x7x128xf32>
    %129 = vector.shape_cast %128 : vector<1x7x128xf32> to vector<7x128xf32>
    %c0_38 = arith.constant 0 : index
    %c0_39 = arith.constant 0 : index
    %130 = vector.load %arg9[%c0_38, %c0_39] : memref<64x128xf32, #tpu.memory_space<vmem>>, vector<32x128xf32>
    %131 = vector.extract_strided_slice %130 {offsets = [6, 0], sizes = [16, 128], strides = [1, 1]} : vector<32x128xf32> to vector<16x128xf32>
    %132 = vector.extract_strided_slice %129 {offsets = [0, 0], sizes = [1, 128], strides = [1, 1]} : vector<7x128xf32> to vector<1x128xf32>
    %133 = vector.shape_cast %132 : vector<1x128xf32> to vector<128xf32>
    %134 = vector.shape_cast %133 : vector<128xf32> to vector<1x128xf32>
    %135 = vector.broadcast %134 : vector<1x128xf32> to vector<16x128xf32>
    %136 = arith.mulf %131, %135 : vector<16x128xf32>
    %137 = vector.extract_strided_slice %130 {offsets = [7, 0], sizes = [16, 128], strides = [1, 1]} : vector<32x128xf32> to vector<16x128xf32>
    %138 = vector.extract_strided_slice %129 {offsets = [1, 0], sizes = [1, 128], strides = [1, 1]} : vector<7x128xf32> to vector<1x128xf32>
    %139 = vector.shape_cast %138 : vector<1x128xf32> to vector<128xf32>
    %140 = vector.shape_cast %139 : vector<128xf32> to vector<1x128xf32>
    %141 = vector.broadcast %140 : vector<1x128xf32> to vector<16x128xf32>
    %142 = arith.mulf %137, %141 : vector<16x128xf32>
    %143 = arith.addf %136, %142 : vector<16x128xf32>
    %144 = vector.extract_strided_slice %130 {offsets = [8, 0], sizes = [16, 128], strides = [1, 1]} : vector<32x128xf32> to vector<16x128xf32>
    %145 = vector.extract_strided_slice %129 {offsets = [2, 0], sizes = [1, 128], strides = [1, 1]} : vector<7x128xf32> to vector<1x128xf32>
    %146 = vector.shape_cast %145 : vector<1x128xf32> to vector<128xf32>
    %147 = vector.shape_cast %146 : vector<128xf32> to vector<1x128xf32>
    %148 = vector.broadcast %147 : vector<1x128xf32> to vector<16x128xf32>
    %149 = arith.mulf %144, %148 : vector<16x128xf32>
    %150 = arith.addf %143, %149 : vector<16x128xf32>
    %151 = vector.extract_strided_slice %130 {offsets = [9, 0], sizes = [16, 128], strides = [1, 1]} : vector<32x128xf32> to vector<16x128xf32>
    %152 = vector.extract_strided_slice %129 {offsets = [3, 0], sizes = [1, 128], strides = [1, 1]} : vector<7x128xf32> to vector<1x128xf32>
    %153 = vector.shape_cast %152 : vector<1x128xf32> to vector<128xf32>
    %154 = vector.shape_cast %153 : vector<128xf32> to vector<1x128xf32>
    %155 = vector.broadcast %154 : vector<1x128xf32> to vector<16x128xf32>
    %156 = arith.mulf %151, %155 : vector<16x128xf32>
    %157 = arith.addf %150, %156 : vector<16x128xf32>
    %158 = vector.extract_strided_slice %130 {offsets = [10, 0], sizes = [16, 128], strides = [1, 1]} : vector<32x128xf32> to vector<16x128xf32>
    %159 = vector.extract_strided_slice %129 {offsets = [4, 0], sizes = [1, 128], strides = [1, 1]} : vector<7x128xf32> to vector<1x128xf32>
    %160 = vector.shape_cast %159 : vector<1x128xf32> to vector<128xf32>
    %161 = vector.shape_cast %160 : vector<128xf32> to vector<1x128xf32>
    %162 = vector.broadcast %161 : vector<1x128xf32> to vector<16x128xf32>
    %163 = arith.mulf %158, %162 : vector<16x128xf32>
    %164 = arith.addf %157, %163 : vector<16x128xf32>
    %c0_40 = arith.constant 0 : index
    %c0_41 = arith.constant 0 : index
    %165 = vector.load %arg10[%c0_40, %c0_41] : memref<32x128xf32, #tpu.memory_space<vmem>>, vector<16x128xf32>
    tpu.vector_store %arg10[%c0_40, %c0_41], %164 {strides = array<i32>} : memref<32x128xf32, #tpu.memory_space<vmem>>, vector<16x128xf32>,
    %c32_42 = arith.constant 32 : index
    %c0_43 = arith.constant 0 : index
    %166 = vector.load %arg9[%c32_42, %c0_43] : memref<64x128xf32, #tpu.memory_space<vmem>>, vector<32x128xf32>
    %167 = vector.extract_strided_slice %166 {offsets = [6, 0], sizes = [16, 128], strides = [1, 1]} : vector<32x128xf32> to vector<16x128xf32>
    %168 = vector.extract_strided_slice %129 {offsets = [0, 0], sizes = [1, 128], strides = [1, 1]} : vector<7x128xf32> to vector<1x128xf32>
    %169 = vector.shape_cast %168 : vector<1x128xf32> to vector<128xf32>
    %170 = vector.shape_cast %169 : vector<128xf32> to vector<1x128xf32>
    %171 = vector.broadcast %170 : vector<1x128xf32> to vector<16x128xf32>
    %172 = arith.mulf %167, %171 : vector<16x128xf32>
    %173 = vector.extract_strided_slice %166 {offsets = [7, 0], sizes = [16, 128], strides = [1, 1]} : vector<32x128xf32> to vector<16x128xf32>
    %174 = vector.extract_strided_slice %129 {offsets = [1, 0], sizes = [1, 128], strides = [1, 1]} : vector<7x128xf32> to vector<1x128xf32>
    %175 = vector.shape_cast %174 : vector<1x128xf32> to vector<128xf32>
    %176 = vector.shape_cast %175 : vector<128xf32> to vector<1x128xf32>
    %177 = vector.broadcast %176 : vector<1x128xf32> to vector<16x128xf32>
    %178 = arith.mulf %173, %177 : vector<16x128xf32>
    %179 = arith.addf %172, %178 : vector<16x128xf32>
    %180 = vector.extract_strided_slice %166 {offsets = [8, 0], sizes = [16, 128], strides = [1, 1]} : vector<32x128xf32> to vector<16x128xf32>
    %181 = vector.extract_strided_slice %129 {offsets = [2, 0], sizes = [1, 128], strides = [1, 1]} : vector<7x128xf32> to vector<1x128xf32>
    %182 = vector.shape_cast %181 : vector<1x128xf32> to vector<128xf32>
    %183 = vector.shape_cast %182 : vector<128xf32> to vector<1x128xf32>
    %184 = vector.broadcast %183 : vector<1x128xf32> to vector<16x128xf32>
    %185 = arith.mulf %180, %184 : vector<16x128xf32>
    %186 = arith.addf %179, %185 : vector<16x128xf32>
    %187 = vector.extract_strided_slice %166 {offsets = [9, 0], sizes = [16, 128], strides = [1, 1]} : vector<32x128xf32> to vector<16x128xf32>
    %188 = vector.extract_strided_slice %129 {offsets = [3, 0], sizes = [1, 128], strides = [1, 1]} : vector<7x128xf32> to vector<1x128xf32>
    %189 = vector.shape_cast %188 : vector<1x128xf32> to vector<128xf32>
    %190 = vector.shape_cast %189 : vector<128xf32> to vector<1x128xf32>
    %191 = vector.broadcast %190 : vector<1x128xf32> to vector<16x128xf32>
    %192 = arith.mulf %187, %191 : vector<16x128xf32>
    %193 = arith.addf %186, %192 : vector<16x128xf32>
    %194 = vector.extract_strided_slice %166 {offsets = [10, 0], sizes = [16, 128], strides = [1, 1]} : vector<32x128xf32> to vector<16x128xf32>
    %195 = vector.extract_strided_slice %129 {offsets = [4, 0], sizes = [1, 128], strides = [1, 1]} : vector<7x128xf32> to vector<1x128xf32>
    %196 = vector.shape_cast %195 : vector<1x128xf32> to vector<128xf32>
    %197 = vector.shape_cast %196 : vector<128xf32> to vector<1x128xf32>
    %198 = vector.broadcast %197 : vector<1x128xf32> to vector<16x128xf32>
    %199 = arith.mulf %194, %198 : vector<16x128xf32>
    %200 = arith.addf %193, %199 : vector<16x128xf32>
    %c16_44 = arith.constant 16 : index
    %c0_45 = arith.constant 0 : index
    %201 = vector.load %arg10[%c16_44, %c0_45] : memref<32x128xf32, #tpu.memory_space<vmem>>, vector<16x128xf32>
    tpu.vector_store %arg10[%c16_44, %c0_45], %200 {strides = array<i32>} : memref<32x128xf32, #tpu.memory_space<vmem>>, vector<16x128xf32>,
    %c0_46 = arith.constant 0 : index
    %c0_47 = arith.constant 0 : index
    %202 = vector.load %arg10[%c0_46, %c0_47] : memref<32x128xf32, #tpu.memory_space<vmem>>, vector<32x128xf32>
    %203 = arith.truncf %202 : vector<32x128xf32> to vector<32x128xbf16>
    %c1_48 = arith.constant 1 : index
    %c0_49 = arith.constant 0 : index
    %c0_50 = arith.constant 0 : index
    %204 = vector.load %arg3[%c1_48, %c0_49, %c0_50] : memref<3x128x128xbf16, #tpu.memory_space<vmem>>, vector<1x128x128xbf16>
    %205 = vector.shape_cast %204 : vector<1x128x128xbf16> to vector<128x128xbf16>
    %cst_51 = arith.constant dense<0.000000e+00> : vector<32x128xf32>
    %206 = tpu.matmul %203, %205, %cst_51 {dimension_numbers = #tpu.dot_dimension_numbers<[1], [0], [0], [1], [0, 0, 1, 1], [], []>} : vector<32x128xbf16>, vector<128x128xbf16>, vector<32x128xf32> -> vector<32x128xf32>
    %c1_52 = arith.constant 1 : index
    %c0_53 = arith.constant 0 : index
    %c0_54 = arith.constant 0 : index
    %207 = vector.load %arg4[%c1_52, %c0_53, %c0_54] : memref<3x1x128xf32, #tpu.memory_space<vmem>>, vector<1x1x128xf32>
    %208 = vector.shape_cast %207 : vector<1x1x128xf32> to vector<1x128xf32>
    %209 = vector.broadcast %208 : vector<1x128xf32> to vector<32x128xf32>
    %210 = arith.addf %206, %209 : vector<32x128xf32>
    %211 = arith.truncf %123 : vector<32x128xf32> to vector<32x128xbf16>
    %c1_55 = arith.constant 1 : index
    %c0_56 = arith.constant 0 : index
    %c0_57 = arith.constant 0 : index
    %212 = vector.load %arg5[%c1_55, %c0_56, %c0_57] : memref<3x128x128xbf16, #tpu.memory_space<vmem>>, vector<1x128x128xbf16>
    %213 = vector.shape_cast %212 : vector<1x128x128xbf16> to vector<128x128xbf16>
    %cst_58 = arith.constant dense<0.000000e+00> : vector<32x128xf32>
    %214 = tpu.matmul %211, %213, %cst_58 {dimension_numbers = #tpu.dot_dimension_numbers<[1], [0], [0], [1], [0, 0, 1, 1], [], []>} : vector<32x128xbf16>, vector<128x128xbf16>, vector<32x128xf32> -> vector<32x128xf32>
    %215 = arith.addf %210, %214 : vector<32x128xf32>
    %cst_59 = arith.constant 0.000000e+00 : f32
    %216 = vector.broadcast %cst_59 : f32 to vector<32x128xf32>
    %217 = arith.maximumf %215, %216 : vector<32x128xf32>
    %218 = vector.extract_strided_slice %217 {offsets = [0, 0], sizes = [16, 128], strides = [1, 1]} : vector<32x128xf32> to vector<16x128xf32>
    %c8_60 = arith.constant 8 : index
    %c0_61 = arith.constant 0 : index
    %219 = vector.load %arg9[%c8_60, %c0_61] : memref<64x128xf32, #tpu.memory_space<vmem>>, vector<16x128xf32>
    tpu.vector_store %arg9[%c8_60, %c0_61], %218 {strides = array<i32>} : memref<64x128xf32, #tpu.memory_space<vmem>>, vector<16x128xf32>,
    %220 = vector.extract_strided_slice %217 {offsets = [16, 0], sizes = [16, 128], strides = [1, 1]} : vector<32x128xf32> to vector<16x128xf32>
    %c40_62 = arith.constant 40 : index
    %c0_63 = arith.constant 0 : index
    %221 = vector.load %arg9[%c40_62, %c0_63] : memref<64x128xf32, #tpu.memory_space<vmem>>, vector<16x128xf32>
    tpu.vector_store %arg9[%c40_62, %c0_63], %220 {strides = array<i32>} : memref<64x128xf32, #tpu.memory_space<vmem>>, vector<16x128xf32>,
    %c2 = arith.constant 2 : index
    %c0_64 = arith.constant 0 : index
    %c0_65 = arith.constant 0 : index
    %222 = vector.load %arg2[%c2, %c0_64, %c0_65] : memref<3x7x128xf32, #tpu.memory_space<vmem>>, vector<1x7x128xf32>
    %223 = vector.shape_cast %222 : vector<1x7x128xf32> to vector<7x128xf32>
    %c0_66 = arith.constant 0 : index
    %c0_67 = arith.constant 0 : index
    %224 = vector.load %arg9[%c0_66, %c0_67] : memref<64x128xf32, #tpu.memory_space<vmem>>, vector<32x128xf32>
    %225 = vector.extract_strided_slice %224 {offsets = [5, 0], sizes = [16, 128], strides = [1, 1]} : vector<32x128xf32> to vector<16x128xf32>
    %226 = vector.extract_strided_slice %223 {offsets = [0, 0], sizes = [1, 128], strides = [1, 1]} : vector<7x128xf32> to vector<1x128xf32>
    %227 = vector.shape_cast %226 : vector<1x128xf32> to vector<128xf32>
    %228 = vector.shape_cast %227 : vector<128xf32> to vector<1x128xf32>
    %229 = vector.broadcast %228 : vector<1x128xf32> to vector<16x128xf32>
    %230 = arith.mulf %225, %229 : vector<16x128xf32>
    %231 = vector.extract_strided_slice %224 {offsets = [6, 0], sizes = [16, 128], strides = [1, 1]} : vector<32x128xf32> to vector<16x128xf32>
    %232 = vector.extract_strided_slice %223 {offsets = [1, 0], sizes = [1, 128], strides = [1, 1]} : vector<7x128xf32> to vector<1x128xf32>
    %233 = vector.shape_cast %232 : vector<1x128xf32> to vector<128xf32>
    %234 = vector.shape_cast %233 : vector<128xf32> to vector<1x128xf32>
    %235 = vector.broadcast %234 : vector<1x128xf32> to vector<16x128xf32>
    %236 = arith.mulf %231, %235 : vector<16x128xf32>
    %237 = arith.addf %230, %236 : vector<16x128xf32>
    %238 = vector.extract_strided_slice %224 {offsets = [7, 0], sizes = [16, 128], strides = [1, 1]} : vector<32x128xf32> to vector<16x128xf32>
    %239 = vector.extract_strided_slice %223 {offsets = [2, 0], sizes = [1, 128], strides = [1, 1]} : vector<7x128xf32> to vector<1x128xf32>
    %240 = vector.shape_cast %239 : vector<1x128xf32> to vector<128xf32>
    %241 = vector.shape_cast %240 : vector<128xf32> to vector<1x128xf32>
    %242 = vector.broadcast %241 : vector<1x128xf32> to vector<16x128xf32>
    %243 = arith.mulf %238, %242 : vector<16x128xf32>
    %244 = arith.addf %237, %243 : vector<16x128xf32>
    %245 = vector.extract_strided_slice %224 {offsets = [8, 0], sizes = [16, 128], strides = [1, 1]} : vector<32x128xf32> to vector<16x128xf32>
    %246 = vector.extract_strided_slice %223 {offsets = [3, 0], sizes = [1, 128], strides = [1, 1]} : vector<7x128xf32> to vector<1x128xf32>
    %247 = vector.shape_cast %246 : vector<1x128xf32> to vector<128xf32>
    %248 = vector.shape_cast %247 : vector<128xf32> to vector<1x128xf32>
    %249 = vector.broadcast %248 : vector<1x128xf32> to vector<16x128xf32>
    %250 = arith.mulf %245, %249 : vector<16x128xf32>
    %251 = arith.addf %244, %250 : vector<16x128xf32>
    %252 = vector.extract_strided_slice %224 {offsets = [9, 0], sizes = [16, 128], strides = [1, 1]} : vector<32x128xf32> to vector<16x128xf32>
    %253 = vector.extract_strided_slice %223 {offsets = [4, 0], sizes = [1, 128], strides = [1, 1]} : vector<7x128xf32> to vector<1x128xf32>
    %254 = vector.shape_cast %253 : vector<1x128xf32> to vector<128xf32>
    %255 = vector.shape_cast %254 : vector<128xf32> to vector<1x128xf32>
    %256 = vector.broadcast %255 : vector<1x128xf32> to vector<16x128xf32>
    %257 = arith.mulf %252, %256 : vector<16x128xf32>
    %258 = arith.addf %251, %257 : vector<16x128xf32>
    %259 = vector.extract_strided_slice %224 {offsets = [10, 0], sizes = [16, 128], strides = [1, 1]} : vector<32x128xf32> to vector<16x128xf32>
    %260 = vector.extract_strided_slice %223 {offsets = [5, 0], sizes = [1, 128], strides = [1, 1]} : vector<7x128xf32> to vector<1x128xf32>
    %261 = vector.shape_cast %260 : vector<1x128xf32> to vector<128xf32>
    %262 = vector.shape_cast %261 : vector<128xf32> to vector<1x128xf32>
    %263 = vector.broadcast %262 : vector<1x128xf32> to vector<16x128xf32>
    %264 = arith.mulf %259, %263 : vector<16x128xf32>
    %265 = arith.addf %258, %264 : vector<16x128xf32>
    %266 = vector.extract_strided_slice %224 {offsets = [11, 0], sizes = [16, 128], strides = [1, 1]} : vector<32x128xf32> to vector<16x128xf32>
    %267 = vector.extract_strided_slice %223 {offsets = [6, 0], sizes = [1, 128], strides = [1, 1]} : vector<7x128xf32> to vector<1x128xf32>
    %268 = vector.shape_cast %267 : vector<1x128xf32> to vector<128xf32>
    %269 = vector.shape_cast %268 : vector<128xf32> to vector<1x128xf32>
    %270 = vector.broadcast %269 : vector<1x128xf32> to vector<16x128xf32>
    %271 = arith.mulf %266, %270 : vector<16x128xf32>
    %272 = arith.addf %265, %271 : vector<16x128xf32>
    %c0_68 = arith.constant 0 : index
    %c0_69 = arith.constant 0 : index
    %273 = vector.load %arg10[%c0_68, %c0_69] : memref<32x128xf32, #tpu.memory_space<vmem>>, vector<16x128xf32>
    tpu.vector_store %arg10[%c0_68, %c0_69], %272 {strides = array<i32>} : memref<32x128xf32, #tpu.memory_space<vmem>>, vector<16x128xf32>,
    %c32_70 = arith.constant 32 : index
    %c0_71 = arith.constant 0 : index
    %274 = vector.load %arg9[%c32_70, %c0_71] : memref<64x128xf32, #tpu.memory_space<vmem>>, vector<32x128xf32>
    %275 = vector.extract_strided_slice %274 {offsets = [5, 0], sizes = [16, 128], strides = [1, 1]} : vector<32x128xf32> to vector<16x128xf32>
    %276 = vector.extract_strided_slice %223 {offsets = [0, 0], sizes = [1, 128], strides = [1, 1]} : vector<7x128xf32> to vector<1x128xf32>
    %277 = vector.shape_cast %276 : vector<1x128xf32> to vector<128xf32>
    %278 = vector.shape_cast %277 : vector<128xf32> to vector<1x128xf32>
    %279 = vector.broadcast %278 : vector<1x128xf32> to vector<16x128xf32>
    %280 = arith.mulf %275, %279 : vector<16x128xf32>
    %281 = vector.extract_strided_slice %274 {offsets = [6, 0], sizes = [16, 128], strides = [1, 1]} : vector<32x128xf32> to vector<16x128xf32>
    %282 = vector.extract_strided_slice %223 {offsets = [1, 0], sizes = [1, 128], strides = [1, 1]} : vector<7x128xf32> to vector<1x128xf32>
    %283 = vector.shape_cast %282 : vector<1x128xf32> to vector<128xf32>
    %284 = vector.shape_cast %283 : vector<128xf32> to vector<1x128xf32>
    %285 = vector.broadcast %284 : vector<1x128xf32> to vector<16x128xf32>
    %286 = arith.mulf %281, %285 : vector<16x128xf32>
    %287 = arith.addf %280, %286 : vector<16x128xf32>
    %288 = vector.extract_strided_slice %274 {offsets = [7, 0], sizes = [16, 128], strides = [1, 1]} : vector<32x128xf32> to vector<16x128xf32>
    %289 = vector.extract_strided_slice %223 {offsets = [2, 0], sizes = [1, 128], strides = [1, 1]} : vector<7x128xf32> to vector<1x128xf32>
    %290 = vector.shape_cast %289 : vector<1x128xf32> to vector<128xf32>
    %291 = vector.shape_cast %290 : vector<128xf32> to vector<1x128xf32>
    %292 = vector.broadcast %291 : vector<1x128xf32> to vector<16x128xf32>
    %293 = arith.mulf %288, %292 : vector<16x128xf32>
    %294 = arith.addf %287, %293 : vector<16x128xf32>
    %295 = vector.extract_strided_slice %274 {offsets = [8, 0], sizes = [16, 128], strides = [1, 1]} : vector<32x128xf32> to vector<16x128xf32>
    %296 = vector.extract_strided_slice %223 {offsets = [3, 0], sizes = [1, 128], strides = [1, 1]} : vector<7x128xf32> to vector<1x128xf32>
    %297 = vector.shape_cast %296 : vector<1x128xf32> to vector<128xf32>
    %298 = vector.shape_cast %297 : vector<128xf32> to vector<1x128xf32>
    %299 = vector.broadcast %298 : vector<1x128xf32> to vector<16x128xf32>
    %300 = arith.mulf %295, %299 : vector<16x128xf32>
    %301 = arith.addf %294, %300 : vector<16x128xf32>
    %302 = vector.extract_strided_slice %274 {offsets = [9, 0], sizes = [16, 128], strides = [1, 1]} : vector<32x128xf32> to vector<16x128xf32>
    %303 = vector.extract_strided_slice %223 {offsets = [4, 0], sizes = [1, 128], strides = [1, 1]} : vector<7x128xf32> to vector<1x128xf32>
    %304 = vector.shape_cast %303 : vector<1x128xf32> to vector<128xf32>
    %305 = vector.shape_cast %304 : vector<128xf32> to vector<1x128xf32>
    %306 = vector.broadcast %305 : vector<1x128xf32> to vector<16x128xf32>
    %307 = arith.mulf %302, %306 : vector<16x128xf32>
    %308 = arith.addf %301, %307 : vector<16x128xf32>
    %309 = vector.extract_strided_slice %274 {offsets = [10, 0], sizes = [16, 128], strides = [1, 1]} : vector<32x128xf32> to vector<16x128xf32>
    %310 = vector.extract_strided_slice %223 {offsets = [5, 0], sizes = [1, 128], strides = [1, 1]} : vector<7x128xf32> to vector<1x128xf32>
    %311 = vector.shape_cast %310 : vector<1x128xf32> to vector<128xf32>
    %312 = vector.shape_cast %311 : vector<128xf32> to vector<1x128xf32>
    %313 = vector.broadcast %312 : vector<1x128xf32> to vector<16x128xf32>
    %314 = arith.mulf %309, %313 : vector<16x128xf32>
    %315 = arith.addf %308, %314 : vector<16x128xf32>
    %316 = vector.extract_strided_slice %274 {offsets = [11, 0], sizes = [16, 128], strides = [1, 1]} : vector<32x128xf32> to vector<16x128xf32>
    %317 = vector.extract_strided_slice %223 {offsets = [6, 0], sizes = [1, 128], strides = [1, 1]} : vector<7x128xf32> to vector<1x128xf32>
    %318 = vector.shape_cast %317 : vector<1x128xf32> to vector<128xf32>
    %319 = vector.shape_cast %318 : vector<128xf32> to vector<1x128xf32>
    %320 = vector.broadcast %319 : vector<1x128xf32> to vector<16x128xf32>
    %321 = arith.mulf %316, %320 : vector<16x128xf32>
    %322 = arith.addf %315, %321 : vector<16x128xf32>
    %c16_72 = arith.constant 16 : index
    %c0_73 = arith.constant 0 : index
    %323 = vector.load %arg10[%c16_72, %c0_73] : memref<32x128xf32, #tpu.memory_space<vmem>>, vector<16x128xf32>
    tpu.vector_store %arg10[%c16_72, %c0_73], %322 {strides = array<i32>} : memref<32x128xf32, #tpu.memory_space<vmem>>, vector<16x128xf32>,
    %c0_74 = arith.constant 0 : index
    %c0_75 = arith.constant 0 : index
    %324 = vector.load %arg10[%c0_74, %c0_75] : memref<32x128xf32, #tpu.memory_space<vmem>>, vector<32x128xf32>
    %325 = arith.truncf %324 : vector<32x128xf32> to vector<32x128xbf16>
    %c2_76 = arith.constant 2 : index
    %c0_77 = arith.constant 0 : index
    %c0_78 = arith.constant 0 : index
    %326 = vector.load %arg3[%c2_76, %c0_77, %c0_78] : memref<3x128x128xbf16, #tpu.memory_space<vmem>>, vector<1x128x128xbf16>
    %327 = vector.shape_cast %326 : vector<1x128x128xbf16> to vector<128x128xbf16>
    %cst_79 = arith.constant dense<0.000000e+00> : vector<32x128xf32>
    %328 = tpu.matmul %325, %327, %cst_79 {dimension_numbers = #tpu.dot_dimension_numbers<[1], [0], [0], [1], [0, 0, 1, 1], [], []>} : vector<32x128xbf16>, vector<128x128xbf16>, vector<32x128xf32> -> vector<32x128xf32>
    %c2_80 = arith.constant 2 : index
    %c0_81 = arith.constant 0 : index
    %c0_82 = arith.constant 0 : index
    %329 = vector.load %arg4[%c2_80, %c0_81, %c0_82] : memref<3x1x128xf32, #tpu.memory_space<vmem>>, vector<1x1x128xf32>
    %330 = vector.shape_cast %329 : vector<1x1x128xf32> to vector<1x128xf32>
    %331 = vector.broadcast %330 : vector<1x128xf32> to vector<32x128xf32>
    %332 = arith.addf %328, %331 : vector<32x128xf32>
    %333 = arith.truncf %217 : vector<32x128xf32> to vector<32x128xbf16>
    %c2_83 = arith.constant 2 : index
    %c0_84 = arith.constant 0 : index
    %c0_85 = arith.constant 0 : index
    %334 = vector.load %arg5[%c2_83, %c0_84, %c0_85] : memref<3x128x128xbf16, #tpu.memory_space<vmem>>, vector<1x128x128xbf16>
    %335 = vector.shape_cast %334 : vector<1x128x128xbf16> to vector<128x128xbf16>
    %cst_86 = arith.constant dense<0.000000e+00> : vector<32x128xf32>
    %336 = tpu.matmul %333, %335, %cst_86 {dimension_numbers = #tpu.dot_dimension_numbers<[1], [0], [0], [1], [0, 0, 1, 1], [], []>} : vector<32x128xbf16>, vector<128x128xbf16>, vector<32x128xf32> -> vector<32x128xf32>
    %337 = arith.addf %332, %336 : vector<32x128xf32>
    %cst_87 = arith.constant 0.000000e+00 : f32
    %338 = vector.broadcast %cst_87 : f32 to vector<32x128xf32>
    %339 = arith.maximumf %337, %338 : vector<32x128xf32>
    %340 = arith.truncf %339 : vector<32x128xf32> to vector<32x128xbf16>
    %c0_88 = arith.constant 0 : index
    %c0_89 = arith.constant 0 : index
    %341 = vector.load %arg6[%c0_88, %c0_89] : memref<128x128xbf16, #tpu.memory_space<vmem>>, vector<128x128xbf16>
    %cst_90 = arith.constant dense<0.000000e+00> : vector<32x128xf32>
    %342 = tpu.matmul %340, %341, %cst_90 {dimension_numbers = #tpu.dot_dimension_numbers<[1], [0], [0], [1], [0, 0, 1, 1], [], []>} : vector<32x128xbf16>, vector<128x128xbf16>, vector<32x128xf32> -> vector<32x128xf32>
    %c0_91 = arith.constant 0 : index
    %c0_92 = arith.constant 0 : index
    %343 = vector.load %arg7[%c0_91, %c0_92] : memref<1x128xf32, #tpu.memory_space<vmem>>, vector<1x128xf32>
    %344 = vector.broadcast %343 : vector<1x128xf32> to vector<32x128xf32>
    %345 = arith.addf %342, %344 : vector<32x128xf32>
    %cst_93 = arith.constant dense<0xFF800000> : vector<32xf32>
    %346 = vector.multi_reduction <maximumf>, %345, %cst_93 [1] : vector<32x128xf32> to vector<32xf32>
    %347 = vector.shape_cast %346 : vector<32xf32> to vector<32x1xf32>
    %348 = vector.broadcast %347 : vector<32x1xf32> to vector<32x128xf32>
    %349 = arith.subf %345, %348 : vector<32x128xf32>
    %350 = math.exp %349 : vector<32x128xf32>
    %cst_94 = arith.constant dense<0.000000e+00> : vector<32xf32>
    %351 = vector.multi_reduction <add>, %350, %cst_94 [1] : vector<32x128xf32> to vector<32xf32>
    %352 = vector.shape_cast %351 : vector<32xf32> to vector<32x1xf32>
    %353 = math.log %352 : vector<32x1xf32>
    %354 = vector.broadcast %353 : vector<32x1xf32> to vector<32x128xf32>
    %355 = arith.subf %349, %354 : vector<32x128xf32>
    %356 = vector.extract_strided_slice %355 {offsets = [0, 0], sizes = [16, 128], strides = [1, 1]} : vector<32x128xf32> to vector<16x128xf32>
    %c0_95 = arith.constant 0 : index
    %c0_96 = arith.constant 0 : index
    %c0_97 = arith.constant 0 : index
    %357 = vector.load %arg8[%c0_95, %c0_96, %c0_97] : memref<2x16x128xf32, #tpu.memory_space<vmem>>, vector<1x16x128xf32>
    %358 = vector.shape_cast %357 : vector<1x16x128xf32> to vector<16x128xf32>
    %359 = vector.shape_cast %356 : vector<16x128xf32> to vector<1x16x128xf32>
    tpu.vector_store %arg8[%c0_95, %c0_96, %c0_97], %359 {strides = array<i32>} : memref<2x16x128xf32, #tpu.memory_space<vmem>>, vector<1x16x128xf32>,
    %360 = vector.extract_strided_slice %355 {offsets = [16, 0], sizes = [16, 128], strides = [1, 1]} : vector<32x128xf32> to vector<16x128xf32>
    %c1_98 = arith.constant 1 : index
    %c0_99 = arith.constant 0 : index
    %c0_100 = arith.constant 0 : index
    %361 = vector.load %arg8[%c1_98, %c0_99, %c0_100] : memref<2x16x128xf32, #tpu.memory_space<vmem>>, vector<1x16x128xf32>
    %362 = vector.shape_cast %361 : vector<1x16x128xf32> to vector<16x128xf32>
    %363 = vector.shape_cast %360 : vector<16x128xf32> to vector<1x16x128xf32>
    tpu.vector_store %arg8[%c1_98, %c0_99, %c0_100], %363 {strides = array<i32>} : memref<2x16x128xf32, #tpu.memory_space<vmem>>, vector<1x16x128xf32>,
    return
  }
  func.func @transform_0(%arg0: i32) -> (i32, i32, i32) {
    %c0_i32 = arith.constant 0 : i32
    %c0_i32_0 = arith.constant 0 : i32
    %c0_i32_1 = arith.constant 0 : i32
    return %arg0, %c0_i32, %c0_i32_0 : i32, i32, i32
  }
  func.func @transform_1(%arg0: i32) -> (i32, i32, i32) {
    %c0_i32 = arith.constant 0 : i32
    %c0_i32_0 = arith.constant 0 : i32
    %c0_i32_1 = arith.constant 0 : i32
    %c0_i32_2 = arith.constant 0 : i32
    return %c0_i32, %c0_i32_0, %c0_i32_1 : i32, i32, i32
  }
  func.func @transform_2(%arg0: i32) -> (i32, i32, i32) {
    %c0_i32 = arith.constant 0 : i32
    %c0_i32_0 = arith.constant 0 : i32
    %c0_i32_1 = arith.constant 0 : i32
    %c0_i32_2 = arith.constant 0 : i32
    return %c0_i32, %c0_i32_0, %c0_i32_1 : i32, i32, i32
  }
  func.func @transform_3(%arg0: i32) -> (i32, i32, i32) {
    %c0_i32 = arith.constant 0 : i32
    %c0_i32_0 = arith.constant 0 : i32
    %c0_i32_1 = arith.constant 0 : i32
    %c0_i32_2 = arith.constant 0 : i32
    return %c0_i32, %c0_i32_0, %c0_i32_1 : i32, i32, i32
  }
  func.func @transform_4(%arg0: i32) -> (i32, i32, i32) {
    %c0_i32 = arith.constant 0 : i32
    %c0_i32_0 = arith.constant 0 : i32
    %c0_i32_1 = arith.constant 0 : i32
    %c0_i32_2 = arith.constant 0 : i32
    return %c0_i32, %c0_i32_0, %c0_i32_1 : i32, i32, i32
  }
  func.func @transform_5(%arg0: i32) -> (i32, i32) {
    %c0_i32 = arith.constant 0 : i32
    %c0_i32_0 = arith.constant 0 : i32
    %c0_i32_1 = arith.constant 0 : i32
    return %c0_i32, %c0_i32_0 : i32, i32
  }
  func.func @transform_6(%arg0: i32) -> (i32, i32) {
    %c0_i32 = arith.constant 0 : i32
    %c0_i32_0 = arith.constant 0 : i32
    %c0_i32_1 = arith.constant 0 : i32
    return %c0_i32, %c0_i32_0 : i32, i32
  }
  func.func @transform_7(%arg0: i32) -> (i32, i32, i32) {
    %c0_i32 = arith.constant 0 : i32
    %c0_i32_0 = arith.constant 0 : i32
    %c0_i32_1 = arith.constant 0 : i32
    return %arg0, %c0_i32, %c0_i32_0 : i32, i32, i32
  }
}

</mosaic_0001>

<llo_original>
// kernel: tpu_custom_call.1
$region0: #{tpu_custom_call.1}
  #allocation0 [shape = 'u32[]', space=smem, size = 0x4, offset = 0x4, fixed_abs, tag = 'smem constant byte address 0x4 - core index']
  #allocation1 [shape = 'u32[72,128]{1,0:T(1,128)}', space=vmem, size = 0x9000, scoped, tag = 'internal scratch']
  #allocation2 [shape = 'f32[64,128]{1,0:T(8,128)}', space=vmem, size = 0x8000, scoped, tag = 'scratch operand']
  #allocation3 [shape = 'f32[32,128]{1,0:T(8,128)}', space=vmem, size = 0x4000, scoped, tag = 'scratch operand']
  %s0 = inlined_call_operand.hbm [shape: f32[4,16,128], index: 0, kind: input, shape index: {}]
  %s1 = inlined_call_operand.hbm [shape: f32[3,7,128], index: 1, kind: input, shape index: {}]
  %s2 = inlined_call_operand.hbm [shape: bf16[3,128,128], index: 2, kind: input, shape index: {}]
  %s3 = inlined_call_operand.hbm [shape: f32[3,1,128], index: 3, kind: input, shape index: {}]
  %s4 = inlined_call_operand.hbm [shape: bf16[3,128,128], index: 4, kind: input, shape index: {}]
  %s5 = inlined_call_operand.hbm [shape: bf16[128,128], index: 5, kind: input, shape index: {}]
  %s6 = inlined_call_operand.vmem [shape: f32[1,128], index: 6, kind: input, shape index: {}]
  %s7 = inlined_call_operand.hbm [shape: f32[4,16,128], index: 7, kind: output, shape index: {}]
  %s8 = sld [smem:[#allocation0]]
  $region85: #{tpu_custom_call.1} parent=0
    _
  %s10 = ssub.s32 1, %s8
  %s11 = scalar_select 0, %s10, %s8
  $region1: #{tpu_custom_call.1} parent=0
    #allocation4 [shape = 'u8[32768]{0}', space=vmem, size = 0x8000, scoped, tag = 'input window, operand 0']
    #allocation5 [shape = 's32[2]{0}', space=sflag, size = 0x8, scoped, tag = 'scoped memory for tpu_custom_call.1']
    #allocation6 [shape = 's32[2]{0}', space=sflag, size = 0x8, scoped, tag = 'scoped memory for tpu_custom_call.1']
    #allocation7 [shape = 'u8[12288]{0}', space=vmem, size = 0x3000, scoped, tag = 'input window, operand 1, single buffered']
    #allocation8 [shape = 's32[1]{0}', space=sflag, size = 0x4, scoped, tag = 'scoped memory for tpu_custom_call.1']
    #allocation9 [shape = 'u8[98304]{0}', space=vmem, size = 0x18000, scoped, tag = 'input window, operand 2, single buffered']
    #allocation10 [shape = 'u8[1536]{0}', space=vmem, size = 0x800, scoped, tag = 'input window, operand 3, single buffered']
    #allocation11 [shape = 's32[1]{0}', space=sflag, size = 0x4, scoped, tag = 'scoped memory for tpu_custom_call.1']
    #allocation12 [shape = 'u8[98304]{0}', space=vmem, size = 0x18000, scoped, tag = 'input window, operand 4, single buffered']
    #allocation13 [shape = 'u8[32768]{0}', space=vmem, size = 0x8000, scoped, tag = 'input window, operand 5, single buffered']
    #allocation14 [shape = 's32[1]{0}', space=sflag, size = 0x4, scoped, tag = 'scoped memory for tpu_custom_call.1']
    #allocation15 [shape = 'u8[32768]{0}', space=vmem, size = 0x8000, scoped, tag = 'output window, operand 0']
    %12 = vsyncpa [#allocation5], 0
    %s13 = scalar_lea.sflag [#allocation5], 1
    %14 = vsyncpa %s13, 0
    %15 = vsyncpa [#allocation8], 0
    %16 = vsyncpa [#allocation11], 0
    %17 = vsyncpa [#allocation14], 0
    %18 = vsyncpa [#allocation6], 0
    %s19 = scalar_lea.sflag [#allocation6], 1
    %20 = vsyncpa %s19, 0
    loop: start=0, step=1, limit=4
    $region2: #{tpu_custom_call.1} parent=1 // loop_pre_header
      _
    $region3: #{tpu_custom_call.1} parent=1 // loop_header
      %s22 = sphi 0, %s26
      %p23 = scmp.ge.s32.totalorder %s22, 4
      %s32 = sphi 0, %s34
      %s35 = sphi 0, %s32
      %s36 = sphi 0, %s35
      %s52 = sphi 0, %s36
      %s56 = sphi 0, %s56
      %s58 = sphi 0, %s56
      %s59 = sphi 0, %s58
      %s73 = sphi 0, %s59
      %s77 = sphi 0, %s77
      %s79 = sphi 0, %s77
      %s80 = sphi 0, %s79
      %s94 = sphi 0, %s80
      %s98 = sphi 0, %s98
      %s100 = sphi 0, %s98
      %s101 = sphi 0, %s100
      %s115 = sphi 0, %s101
      %s119 = sphi 0, %s119
      %s121 = sphi 0, %s119
      %s122 = sphi 0, %s121
      %s136 = sphi 0, %s122
      %s140 = sphi 0, %s140
      %s142 = sphi 0, %s140
      %s143 = sphi 0, %s142
      %s157 = sphi 0, %s143
      %s161 = sphi 0, %s161
      %s163 = sphi 0, %s161
      %s164 = sphi 0, %s163
      %s178 = sphi 0, %s164
      %s184 = sphi 0, %s186
      %s187 = sphi 0, %s184
      %s188 = sphi 0, %s187
      %s204 = sphi 0, %s188
    $region4: #{tpu_custom_call.1} parent=1 // loop_header_branch
      %25 = sbr.rel (%p23) target = $region8
    $region5: #{tpu_custom_call.1} parent=1 // loop_body
      %s27 = ssub.s32 %s22, 1
      %s28 = ssub.s32 %s22, 2
      %s29 = sadd.s32 %s22, 1
      %s30 = ssub.s32 %s22, %s29
      %p31 = scmp.eq.s32.totalorder %s30, 0
      %s33 = sadd.s32 %s32, 1
      %s34 = scalar_select %p31, %s32, %s33
      %p37 = pneg %p31
      %p38 = scmp.eq.s32.totalorder %s22, 1
      %p39 = por %p37, %p38
      %p40 = scmp.ne.s32.totalorder %s32, %s35
      %p41 = scmp.eq.s32.totalorder %s22, 0
      %p42 = por %p40, %p41
      %p43 = scmp.ne.s32.totalorder %s32, %s35
      %p44 = scmp.eq.s32.totalorder %s27, 1
      %p45 = por %p43, %p44
      %p46 = scmp.ne.s32.totalorder %s35, %s36
      %p47 = scmp.eq.s32.totalorder %s27, 0
      %p48 = por %p46, %p47
      %p49 = scmp.ne.s32.totalorder %s35, %s36
      %p50 = scmp.eq.s32.totalorder %s28, 1
      %p51 = por %p49, %p50
      %p53 = scmp.ne.s32.totalorder %s36, %s52
      %p54 = scmp.eq.s32.totalorder %s28, 0
      %p55 = por %p53, %p54
      %s57 = sadd.s32 %s56, 1
      %p60 = scmp.eq.s32.totalorder %s22, 1
      %p61 = scmp.ne.s32.totalorder %s56, %s58
      %p62 = scmp.eq.s32.totalorder %s22, 0
      %p63 = por %p61, %p62
      %p64 = scmp.ne.s32.totalorder %s56, %s58
      %p65 = scmp.eq.s32.totalorder %s27, 1
      %p66 = por %p64, %p65
      %p67 = scmp.ne.s32.totalorder %s58, %s59
      %p68 = scmp.eq.s32.totalorder %s27, 0
      %p69 = por %p67, %p68
      %p70 = scmp.ne.s32.totalorder %s58, %s59
      %p71 = scmp.eq.s32.totalorder %s28, 1
      %p72 = por %p70, %p71
      %p74 = scmp.ne.s32.totalorder %s59, %s73
      %p75 = scmp.eq.s32.totalorder %s28, 0
      %p76 = por %p74, %p75
      %s78 = sadd.s32 %s77, 1
      %p81 = scmp.eq.s32.totalorder %s22, 1
      %p82 = scmp.ne.s32.totalorder %s77, %s79
      %p83 = scmp.eq.s32.totalorder %s22, 0
      %p84 = por %p82, %p83
      %p85 = scmp.ne.s32.totalorder %s77, %s79
      %p86 = scmp.eq.s32.totalorder %s27, 1
      %p87 = por %p85, %p86
      %p88 = scmp.ne.s32.totalorder %s79, %s80
      %p89 = scmp.eq.s32.totalorder %s27, 0
      %p90 = por %p88, %p89
      %p91 = scmp.ne.s32.totalorder %s79, %s80
      %p92 = scmp.eq.s32.totalorder %s28, 1
      %p93 = por %p91, %p92
      %p95 = scmp.ne.s32.totalorder %s80, %s94
      %p96 = scmp.eq.s32.totalorder %s28, 0
      %p97 = por %p95, %p96
      %s99 = sadd.s32 %s98, 1
      %p102 = scmp.eq.s32.totalorder %s22, 1
      %p103 = scmp.ne.s32.totalorder %s98, %s100
      %p104 = scmp.eq.s32.totalorder %s22, 0
      %p105 = por %p103, %p104
      %p106 = scmp.ne.s32.totalorder %s98, %s100
      %p107 = scmp.eq.s32.totalorder %s27, 1
      %p108 = por %p106, %p107
      %p109 = scmp.ne.s32.totalorder %s100, %s101
      %p110 = scmp.eq.s32.totalorder %s27, 0
      %p111 = por %p109, %p110
      %p112 = scmp.ne.s32.totalorder %s100, %s101
      %p113 = scmp.eq.s32.totalorder %s28, 1
      %p114 = por %p112, %p113
      %p116 = scmp.ne.s32.totalorder %s101, %s115
      %p117 = scmp.eq.s32.totalorder %s28, 0
      %p118 = por %p116, %p117
      %s120 = sadd.s32 %s119, 1
      %p123 = scmp.eq.s32.totalorder %s22, 1
      %p124 = scmp.ne.s32.totalorder %s119, %s121
      %p125 = scmp.eq.s32.totalorder %s22, 0
      %p126 = por %p124, %p125
      %p127 = scmp.ne.s32.totalorder %s119, %s121
      %p128 = scmp.eq.s32.totalorder %s27, 1
      %p129 = por %p127, %p128
      %p130 = scmp.ne.s32.totalorder %s121, %s122
      %p131 = scmp.eq.s32.totalorder %s27, 0
      %p132 = por %p130, %p131
      %p133 = scmp.ne.s32.totalorder %s121, %s122
      %p134 = scmp.eq.s32.totalorder %s28, 1
      %p135 = por %p133, %p134
      %p137 = scmp.ne.s32.totalorder %s122, %s136
      %p138 = scmp.eq.s32.totalorder %s28, 0
      %p139 = por %p137, %p138
      %s141 = sadd.s32 %s140, 1
      %p144 = scmp.eq.s32.totalorder %s22, 1
      %p145 = scmp.ne.s32.totalorder %s140, %s142
      %p146 = scmp.eq.s32.totalorder %s22, 0
      %p147 = por %p145, %p146
      %p148 = scmp.ne.s32.totalorder %s140, %s142
      %p149 = scmp.eq.s32.totalorder %s27, 1
      %p150 = por %p148, %p149
      %p151 = scmp.ne.s32.totalorder %s142, %s143
      %p152 = scmp.eq.s32.totalorder %s27, 0
      %p153 = por %p151, %p152
      %p154 = scmp.ne.s32.totalorder %s142, %s143
      %p155 = scmp.eq.s32.totalorder %s28, 1
      %p156 = por %p154, %p155
      %p158 = scmp.ne.s32.totalorder %s143, %s157
      %p159 = scmp.eq.s32.totalorder %s28, 0
      %p160 = por %p158, %p159
      %s162 = sadd.s32 %s161, 1
      %p165 = scmp.eq.s32.totalorder %s22, 1
      %p166 = scmp.ne.s32.totalorder %s161, %s163
      %p167 = scmp.eq.s32.totalorder %s22, 0
      %p168 = por %p166, %p167
      %p169 = scmp.ne.s32.totalorder %s161, %s163
      %p170 = scmp.eq.s32.totalorder %s27, 1
      %p171 = por %p169, %p170
      %p172 = scmp.ne.s32.totalorder %s163, %s164
      %p173 = scmp.eq.s32.totalorder %s27, 0
      %p174 = por %p172, %p173
      %p175 = scmp.ne.s32.totalorder %s163, %s164
      %p176 = scmp.eq.s32.totalorder %s28, 1
      %p177 = por %p175, %p176
      %p179 = scmp.ne.s32.totalorder %s164, %s178
      %p180 = scmp.eq.s32.totalorder %s28, 0
      %p181 = por %p179, %p180
      %s182 = ssub.s32 %s22, %s29
      %p183 = scmp.eq.s32.totalorder %s182, 0
      %s185 = sadd.s32 %s184, 1
      %s186 = scalar_select %p183, %s184, %s185
      %p189 = pneg %p183
      %p190 = scmp.eq.s32.totalorder %s22, 1
      %p191 = por %p189, %p190
      %p192 = scmp.ne.s32.totalorder %s184, %s187
      %p193 = scmp.eq.s32.totalorder %s22, 0
      %p194 = por %p192, %p193
      %p195 = scmp.ne.s32.totalorder %s184, %s187
      %p196 = scmp.eq.s32.totalorder %s27, 1
      %p197 = por %p195, %p196
      %p198 = scmp.ne.s32.totalorder %s187, %s188
      %p199 = scmp.eq.s32.totalorder %s27, 0
      %p200 = por %p198, %p199
      %p201 = scmp.ne.s32.totalorder %s187, %s188
      %p202 = scmp.eq.s32.totalorder %s28, 1
      %p203 = por %p201, %p202
      %p205 = scmp.ne.s32.totalorder %s188, %s204
      %p206 = scmp.eq.s32.totalorder %s28, 0
      %p207 = por %p205, %p206
      %p208 = scmp.le.s32.totalorder 1, %s22
      %p209 = scmp.lt.s32.totalorder %s22, 3
      %p210 = pnand %p208, %p209
      %p211 = pneg %p210
      // Predicated region
      $region9: #{tpu_custom_call.1} parent=5 // pred_check
        _
      $region10: #{tpu_custom_call.1} parent=5 // pred_check_branch
        %213 = sbr.rel (%p210) target = $region12
      $region11: #{tpu_custom_call.1} parent=5 // pred_region
        %s214 = ssub.s32 %s22, 1
        // Predicated region
        $region13: #{tpu_custom_call.1} parent=11 // pred_check
          %p215 = pneg %p69
        $region14: #{tpu_custom_call.1} parent=11 // pred_check_branch
          %217 = sbr.rel (%p215) target = $region16
        $region15: #{tpu_custom_call.1} parent=11 // pred_region
          %219 = vsyncadd [#allocation8], 0
          %s220 = sshll.u32 %s1, 4
          %s221 = int_to_ptr.hbm [resolvable:$true] %s220
          %s222 = sshll.u32 [#allocation7], 4
          %s223 = int_to_ptr.vmem [resolvable:$true] %s222
          %228 = dma.hbm_to_vmem [thread:$0]  %s221, 384, %s223, [#allocation8], 128, 128, 8
        $region16: #{tpu_custom_call.1} parent=11 // pred_fallthru
          _
        // Predicated region
        $region17: #{tpu_custom_call.1} parent=11 // pred_check
          %p229 = pneg %p90
        $region18: #{tpu_custom_call.1} parent=11 // pred_check_branch
          %231 = sbr.rel (%p229) target = $region20
        $region19: #{tpu_custom_call.1} parent=11 // pred_region
          %233 = vsyncadd [#allocation8], 0
          %s234 = sshll.u32 %s2, 4
          %s235 = int_to_ptr.hbm [resolvable:$true] %s234
          %s236 = sshll.u32 [#allocation9], 4
          %s237 = int_to_ptr.vmem [resolvable:$true] %s236
          %242 = dma.hbm_to_vmem [thread:$0]  %s235, 3072, %s237, [#allocation8], 64, 64, 4
        $region20: #{tpu_custom_call.1} parent=11 // pred_fallthru
          _
        // Predicated region
        $region21: #{tpu_custom_call.1} parent=11 // pred_check
          %p243 = pneg %p111
        $region22: #{tpu_custom_call.1} parent=11 // pred_check_branch
          %245 = sbr.rel (%p243) target = $region24
        $region23: #{tpu_custom_call.1} parent=11 // pred_region
          %247 = vsyncadd [#allocation11], 0
          %s248 = sshll.u32 %s3, 4
          %s249 = int_to_ptr.hbm [resolvable:$true] %s248
          %s250 = sshll.u32 [#allocation10], 4
          %s251 = int_to_ptr.vmem [resolvable:$true] %s250
          %256 = dma.hbm_to_vmem [thread:$0]  %s249, 48, %s251, [#allocation11], 16, 16, 1
        $region24: #{tpu_custom_call.1} parent=11 // pred_fallthru
          _
        // Predicated region
        $region25: #{tpu_custom_call.1} parent=11 // pred_check
          %p257 = pneg %p132
        $region26: #{tpu_custom_call.1} parent=11 // pred_check_branch
          %259 = sbr.rel (%p257) target = $region28
        $region27: #{tpu_custom_call.1} parent=11 // pred_region
          %261 = vsyncadd [#allocation11], 0
          %s262 = sshll.u32 %s4, 4
          %s263 = int_to_ptr.hbm [resolvable:$true] %s262
          %s264 = sshll.u32 [#allocation12], 4
          %s265 = int_to_ptr.vmem [resolvable:$true] %s264
          %270 = dma.hbm_to_vmem [thread:$0]  %s263, 3072, %s265, [#allocation11], 64, 64, 4
        $region28: #{tpu_custom_call.1} parent=11 // pred_fallthru
          _
        // Predicated region
        $region29: #{tpu_custom_call.1} parent=11 // pred_check
          %p271 = pneg %p153
        $region30: #{tpu_custom_call.1} parent=11 // pred_check_branch
          %273 = sbr.rel (%p271) target = $region32
        $region31: #{tpu_custom_call.1} parent=11 // pred_region
          %275 = vsyncadd [#allocation14], 0
          %s276 = sshll.u32 %s5, 4
          %s277 = int_to_ptr.hbm [resolvable:$true] %s276
          %s278 = sshll.u32 [#allocation13], 4
          %s279 = int_to_ptr.vmem [resolvable:$true] %s278
          %284 = dma.hbm_to_vmem [thread:$0]  %s277, 1024, %s279, [#allocation14], 64, 64, 4
        $region32: #{tpu_custom_call.1} parent=11 // pred_fallthru
          _
        // Predicated region
        $region33: #{tpu_custom_call.1} parent=11 // pred_check
          %p285 = pneg %p174
        $region34: #{tpu_custom_call.1} parent=11 // pred_check_branch
          %287 = sbr.rel (%p285) target = $region36
        $region35: #{tpu_custom_call.1} parent=11 // pred_region
          _
        $region36: #{tpu_custom_call.1} parent=11 // pred_fallthru
          _
      $region12: #{tpu_custom_call.1} parent=5 // pred_fallthru
        _
      %p288 = scmp.lt.s32.totalorder %s22, 2
      // Predicated region
      $region37: #{tpu_custom_call.1} parent=5 // pred_check
        %p289 = pneg %p288
      $region38: #{tpu_custom_call.1} parent=5 // pred_check_branch
        %291 = sbr.rel (%p289) target = $region40
      $region39: #{tpu_custom_call.1} parent=5 // pred_region
        // Predicated region
        $region41: #{tpu_custom_call.1} parent=39 // pred_check
          %p292 = pneg %p42
        $region42: #{tpu_custom_call.1} parent=39 // pred_check_branch
          %294 = sbr.rel (%p292) target = $region44
        $region43: #{tpu_custom_call.1} parent=39 // pred_region
          %s295 = sand.u32 %s32, 1
          %s296 = scalar_lea.sflag [#allocation5], %s295
          %s297 = sand.u32 %s32, 1
          %s298 = smul.addr %s297, 32
          %s299 = scalar_lea.vmem [#allocation4], %s298
          %s300 = smul.u32 2, %s22
          %302 = vsyncadd %s296, 0
          %s303 = smul.addr %s300, 2
          %s304 = smul.addr %s303, 8
          %s305 = scalar_lea.hbm %s0, %s304
          %s306 = sshll.u32 %s305, 4
          %s307 = int_to_ptr.hbm [resolvable:$true] %s306
          %s308 = sshll.u32 %s299, 4
          %s309 = int_to_ptr.vmem [resolvable:$true] %s308
          %314 = dma.hbm_to_vmem [thread:$0]  %s307, 512, %s309, %s296, 128, 128, 8
        $region44: #{tpu_custom_call.1} parent=39 // pred_fallthru
          _
      $region40: #{tpu_custom_call.1} parent=5 // pred_fallthru
        _
      %p315 = scmp.le.s32.totalorder 1, %s22
      %p316 = scmp.lt.s32.totalorder %s22, 3
      %p317 = pnand %p315, %p316
      %p318 = pneg %p317
      // Predicated region
      $region45: #{tpu_custom_call.1} parent=5 // pred_check
        _
      $region46: #{tpu_custom_call.1} parent=5 // pred_check_branch
        %320 = sbr.rel (%p317) target = $region48
      $region47: #{tpu_custom_call.1} parent=5 // pred_region
        %s321 = ssub.s32 %s22, 1
        %s322 = sand.u32 %s35, 1
        %s323 = scalar_lea.sflag [#allocation5], %s322
        %s324 = sand.u32 %s35, 1
        %s325 = smul.addr %s324, 32
        %s326 = scalar_lea.vmem [#allocation4], %s325
        // Predicated region
        $region49: #{tpu_custom_call.1} parent=47 // pred_check
          %p327 = pneg %p48
        $region50: #{tpu_custom_call.1} parent=47 // pred_check_branch
          %329 = sbr.rel (%p327) target = $region52
        $region51: #{tpu_custom_call.1} parent=47 // pred_region
          %331 = dma.done %s323, 512
        $region52: #{tpu_custom_call.1} parent=47 // pred_fallthru
          _
        // Predicated region
        $region53: #{tpu_custom_call.1} parent=47 // pred_check
          %p332 = pneg %p69
        $region54: #{tpu_custom_call.1} parent=47 // pred_check_branch
          %334 = sbr.rel (%p332) target = $region56
        $region55: #{tpu_custom_call.1} parent=47 // pred_region
          %336 = dma.done [#allocation8], 384
        $region56: #{tpu_custom_call.1} parent=47 // pred_fallthru
          _
        // Predicated region
        $region57: #{tpu_custom_call.1} parent=47 // pred_check
          %p337 = pneg %p90
        $region58: #{tpu_custom_call.1} parent=47 // pred_check_branch
          %339 = sbr.rel (%p337) target = $region60
        $region59: #{tpu_custom_call.1} parent=47 // pred_region
          %341 = dma.done [#allocation8], 3072
        $region60: #{tpu_custom_call.1} parent=47 // pred_fallthru
          _
        // Predicated region
        $region61: #{tpu_custom_call.1} parent=47 // pred_check
          %p342 = pneg %p111
        $region62: #{tpu_custom_call.1} parent=47 // pred_check_branch
          %344 = sbr.rel (%p342) target = $region64
        $region63: #{tpu_custom_call.1} parent=47 // pred_region
          %346 = dma.done [#allocation11], 48
        $region64: #{tpu_custom_call.1} parent=47 // pred_fallthru
          _
        // Predicated region
        $region65: #{tpu_custom_call.1} parent=47 // pred_check
          %p347 = pneg %p132
        $region66: #{tpu_custom_call.1} parent=47 // pred_check_branch
          %349 = sbr.rel (%p347) target = $region68
        $region67: #{tpu_custom_call.1} parent=47 // pred_region
          %351 = dma.done [#allocation11], 3072
        $region68: #{tpu_custom_call.1} parent=47 // pred_fallthru
          _
        // Predicated region
        $region69: #{tpu_custom_call.1} parent=47 // pred_check
          %p352 = pneg %p153
        $region70: #{tpu_custom_call.1} parent=47 // pred_check_branch
          %354 = sbr.rel (%p352) target = $region72
        $region71: #{tpu_custom_call.1} parent=47 // pred_region
          %356 = dma.done [#allocation14], 1024
        $region72: #{tpu_custom_call.1} parent=47 // pred_fallthru
          _
        %s357 = sand.u32 %s35, 1
        %s358 = scalar_lea.sflag [#allocation5], %s357
        %s359 = sand.u32 %s35, 1
        %s360 = smul.addr %s359, 32
        %s361 = scalar_lea.vmem [#allocation4], %s360
        %p362 = pneg %p48
        %p363 = pneg %p45
        %p364 = pneg %p69
        %p365 = pneg %p66
        %p366 = pneg %p90
        %p367 = pneg %p87
        %p368 = pneg %p111
        %p369 = pneg %p108
        %p370 = pneg %p132
        %p371 = pneg %p129
        %p372 = pneg %p153
        %p373 = pneg %p150
        %p374 = pneg %p174
        %p375 = pneg %p171
        %p376 = pneg %p200
        %p377 = pneg %p197
        %s378 = sand.u32 %s187, 1
        %s379 = scalar_lea.sflag [#allocation6], %s378
        %s380 = sand.u32 %s187, 1
        %s381 = smul.addr %s380, 32
        %s382 = scalar_lea.vmem [#allocation15], %s381
        %s383 = smul.u32 2, %s27
        %s384 = smul.u32 2, %s27
        %385 = vst [vmem:[#allocation2] sm:$0xff] 0.0
        %386 = vst [vmem:[#allocation2 + $0x18] sm:$0xff] 0.0
        %v387 = vld [vmem:[%s326] sm:$0xff]
        %v388 = vld [vmem:[%s326 + $0x8] sm:$0xff]
        %389 = vst [vmem:[#allocation2 + $0x8] sm:$0xff] %v387
        %390 = vst [vmem:[#allocation2 + $0x10] sm:$0xff] %v388
        %391 = vst [vmem:[#allocation2 + $0x20] sm:$0xff] 0.0
        %392 = vst [vmem:[#allocation2 + $0x38] sm:$0xff] 0.0
        %s393 = scalar_lea.vmem %s326, 16 [#allocation4]
        %v394 = vld [vmem:[%s393] sm:$0xff]
        %v395 = vld [vmem:[%s393 + $0x8] sm:$0xff]
        %396 = vst [vmem:[#allocation2 + $0x28] sm:$0xff] %v394
        %397 = vst [vmem:[#allocation2 + $0x30] sm:$0xff] %v395
        %v398 = vld [vmem:[#allocation7] sm:$0x7f]
        %v399 = vld [vmem:[#allocation2] sm:$0xff]
        %v400 = vld [vmem:[#allocation2 + $0x8] sm:$0xff]
        %v401 = vld [vmem:[#allocation2 + $0x10] sm:$0xff]
        %v402 = vld [vmem:[#allocation2 + $0x18] sm:$0xff]
        %v403 = vperm.slane %v398, 0
        %v404 = vmul.f32 %v399, %v403
        %v405 = vmul.f32 %v400, %v403
        %v406 = vmul.f32 %v401, %v403
        %v407 = vperm.slane %v398, 1
        %v408 = vmul.f32 %v399, %v407
        %v409 = vmul.f32 %v400, %v407
        %v410 = vmul.f32 %v401, %v407
        %vm414 = vcmask 1046528
        %v415 = vrot.slane %v408, 1
        %v416 = vrot.slane %v409, 1
        %v417 = vsel %vm414, %v415, %v416
        %v418 = vrot.slane %v410, 1
        %v419 = vsel %vm414, %v416, %v418
        %v423 = vadd.f32 %v404, %v417
        %v424 = vadd.f32 %v405, %v419
        %v425 = vadd.f32 %v406, %v418
        %v426 = vperm.slane %v398, 2
        %v427 = vmul.f32 %v399, %v426
        %v428 = vmul.f32 %v400, %v426
        %v429 = vmul.f32 %v401, %v426
        %vm433 = vcmask 1045504
        %v434 = vrot.slane %v427, 2
        %v435 = vrot.slane %v428, 2
        %v436 = vsel %vm433, %v434, %v435
        %v437 = vrot.slane %v429, 2
        %v438 = vsel %vm433, %v435, %v437
        %v442 = vadd.f32 %v423, %v436
        %v443 = vadd.f32 %v424, %v438
        %v444 = vadd.f32 %v425, %v437
        %v445 = vperm.slane %v398, 3
        %v446 = vmul.f32 %v400, %v445
        %v447 = vmul.f32 %v401, %v445
        %vm450 = vcmask 1044480
        %v451 = vrot.slane %v446, 3
        %v452 = vrot.slane %v447, 3
        %v453 = vsel %vm450, %v451, %v452
        %v457 = vadd.f32 %v442, %v451
        %v458 = vadd.f32 %v443, %v453
        %v459 = vadd.f32 %v444, %v452
        %v460 = vperm.slane %v398, 4
        %v461 = vmul.f32 %v400, %v460
        %v462 = vmul.f32 %v401, %v460
        %v463 = vmul.f32 %v402, %v460
        %vm467 = vcmask 1043456
        %v468 = vrot.slane %v461, 4
        %v469 = vrot.slane %v462, 4
        %v470 = vsel %vm467, %v468, %v469
        %v471 = vrot.slane %v463, 4
        %v472 = vsel %vm467, %v469, %v471
        %v476 = vadd.f32 %v457, %v468
        %v477 = vadd.f32 %v458, %v470
        %v478 = vadd.f32 %v459, %v472
        %v479 = vperm.slane %v398, 5
        %v480 = vmul.f32 %v400, %v479
        %v481 = vmul.f32 %v401, %v479
        %v482 = vmul.f32 %v402, %v479
        %vm486 = vcmask 1042432
        %v487 = vrot.slane %v480, 5
        %v488 = vrot.slane %v481, 5
        %v489 = vsel %vm486, %v487, %v488
        %v490 = vrot.slane %v482, 5
        %v491 = vsel %vm486, %v488, %v490
        %v495 = vadd.f32 %v476, %v487
        %v496 = vadd.f32 %v477, %v489
        %v497 = vadd.f32 %v478, %v491
        %v498 = vperm.slane %v398, 6
        %v499 = vmul.f32 %v400, %v498
        %v500 = vmul.f32 %v401, %v498
        %v501 = vmul.f32 %v402, %v498
        %vm505 = vcmask 1041408
        %v506 = vrot.slane %v499, 6
        %v507 = vrot.slane %v500, 6
        %v508 = vsel %vm505, %v506, %v507
        %v509 = vrot.slane %v501, 6
        %v510 = vsel %vm505, %v507, %v509
        %v514 = vadd.f32 %v495, %v506
        %v515 = vadd.f32 %v496, %v508
        %v516 = vadd.f32 %v497, %v510
        %517 = vst [vmem:[#allocation3 - $0x5] sm:$0xe0] %v514
        %518 = vst [vmem:[#allocation3 + $0x3] sm:$0xff] %v515
        %519 = vst [vmem:[#allocation3 + $0xb] sm:$0x1f] %v516
        %v520 = vld [vmem:[#allocation2 + $0x20] sm:$0xff]
        %v521 = vld [vmem:[#allocation2 + $0x28] sm:$0xff]
        %v522 = vld [vmem:[#allocation2 + $0x30] sm:$0xff]
        %v523 = vld [vmem:[#allocation2 + $0x38] sm:$0xff]
        %v524 = vmul.f32 %v520, %v403
        %v525 = vmul.f32 %v521, %v403
        %v526 = vmul.f32 %v522, %v403
        %v527 = vmul.f32 %v520, %v407
        %v528 = vmul.f32 %v521, %v407
        %v529 = vmul.f32 %v522, %v407
        %v533 = vrot.slane %v527, 1
        %v534 = vrot.slane %v528, 1
        %v535 = vsel %vm414, %v533, %v534
        %v536 = vrot.slane %v529, 1
        %v537 = vsel %vm414, %v534, %v536
        %v541 = vadd.f32 %v524, %v535
        %v542 = vadd.f32 %v525, %v537
        %v543 = vadd.f32 %v526, %v536
        %v544 = vmul.f32 %v520, %v426
        %v545 = vmul.f32 %v521, %v426
        %v546 = vmul.f32 %v522, %v426
        %v550 = vrot.slane %v544, 2
        %v551 = vrot.slane %v545, 2
        %v552 = vsel %vm433, %v550, %v551
        %v553 = vrot.slane %v546, 2
        %v554 = vsel %vm433, %v551, %v553
        %v558 = vadd.f32 %v541, %v552
        %v559 = vadd.f32 %v542, %v554
        %v560 = vadd.f32 %v543, %v553
        %v561 = vmul.f32 %v521, %v445
        %v562 = vmul.f32 %v522, %v445
        %v565 = vrot.slane %v561, 3
        %v566 = vrot.slane %v562, 3
        %v567 = vsel %vm450, %v565, %v566
        %v571 = vadd.f32 %v558, %v565
        %v572 = vadd.f32 %v559, %v567
        %v573 = vadd.f32 %v560, %v566
        %v574 = vmul.f32 %v521, %v460
        %v575 = vmul.f32 %v522, %v460
        %v576 = vmul.f32 %v523, %v460
        %v580 = vrot.slane %v574, 4
        %v581 = vrot.slane %v575, 4
        %v582 = vsel %vm467, %v580, %v581
        %v583 = vrot.slane %v576, 4
        %v584 = vsel %vm467, %v581, %v583
        %v588 = vadd.f32 %v571, %v580
        %v589 = vadd.f32 %v572, %v582
        %v590 = vadd.f32 %v573, %v584
        %v591 = vmul.f32 %v521, %v479
        %v592 = vmul.f32 %v522, %v479
        %v593 = vmul.f32 %v523, %v479
        %v597 = vrot.slane %v591, 5
        %v598 = vrot.slane %v592, 5
        %v599 = vsel %vm486, %v597, %v598
        %v600 = vrot.slane %v593, 5
        %v601 = vsel %vm486, %v598, %v600
        %v605 = vadd.f32 %v588, %v597
        %v606 = vadd.f32 %v589, %v599
        %v607 = vadd.f32 %v590, %v601
        %v608 = vmul.f32 %v521, %v498
        %v609 = vmul.f32 %v522, %v498
        %v610 = vmul.f32 %v523, %v498
        %v614 = vrot.slane %v608, 6
        %v615 = vrot.slane %v609, 6
        %v616 = vsel %vm505, %v614, %v615
        %v617 = vrot.slane %v610, 6
        %v618 = vsel %vm505, %v615, %v617
        %v622 = vadd.f32 %v605, %v614
        %v623 = vadd.f32 %v606, %v616
        %v624 = vadd.f32 %v607, %v618
        %625 = vst [vmem:[#allocation3 + $0xb] sm:$0xe0] %v622
        %626 = vst [vmem:[#allocation3 + $0x13] sm:$0xff] %v623
        %627 = vst [vmem:[#allocation3 + $0x1b] sm:$0x1f] %v624
        %v628 = vld [vmem:[#allocation3] sm:$0xff]
        %v629 = vld [vmem:[#allocation3 + $0x8] sm:$0xff]
        %v630 = vld [vmem:[#allocation3 + $0x10] sm:$0xff]
        %v631 = vld [vmem:[#allocation3 + $0x18] sm:$0xff]
        %v632 = vpack.c.bf16 %v629, %v628
        %v633 = vpack.c.bf16 %v631, %v630
        %v634 = vld [vmem:[#allocation9] sm:$0xf]
        %v635 = vld [vmem:[#allocation9 + $0x4] sm:$0xf]
        %v636 = vld [vmem:[#allocation9 + $0x8] sm:$0xf]
        %v637 = vld [vmem:[#allocation9 + $0xc] sm:$0xf]
        %v638 = vld [vmem:[#allocation9 + $0x10] sm:$0xf]
        %v639 = vld [vmem:[#allocation9 + $0x14] sm:$0xf]
        %v640 = vld [vmem:[#allocation9 + $0x18] sm:$0xf]
        %v641 = vld [vmem:[#allocation9 + $0x1c] sm:$0xf]
        %v642 = vld [vmem:[#allocation9 + $0x20] sm:$0xf]
        %v643 = vld [vmem:[#allocation9 + $0x24] sm:$0xf]
        %v644 = vld [vmem:[#allocation9 + $0x28] sm:$0xf]
        %v645 = vld [vmem:[#allocation9 + $0x2c] sm:$0xf]
        %v646 = vld [vmem:[#allocation9 + $0x30] sm:$0xf]
        %v647 = vld [vmem:[#allocation9 + $0x34] sm:$0xf]
        %v648 = vld [vmem:[#allocation9 + $0x38] sm:$0xf]
        %v649 = vld [vmem:[#allocation9 + $0x3c] sm:$0xf]
        %v650 = vld [vmem:[#allocation10] sm:$0x1]
        %v652 = vperm.slane %v650, 0
        %v670 = vunpack.c.l.b16 %v634
        %v671 = vunpack.c.l.b16 %v635
        %v672 = vunpack.c.l.b16 %v636
        %v673 = vunpack.c.l.b16 %v637
        %v674 = vunpack.c.l.b16 %v638
        %v675 = vunpack.c.l.b16 %v639
        %v676 = vunpack.c.l.b16 %v640
        %v677 = vunpack.c.l.b16 %v641
        %v678 = vunpack.c.l.b16 %v642
        %v679 = vunpack.c.l.b16 %v643
        %v680 = vunpack.c.l.b16 %v644
        %v681 = vunpack.c.l.b16 %v645
        %v682 = vunpack.c.l.b16 %v646
        %v683 = vunpack.c.l.b16 %v647
        %v684 = vunpack.c.l.b16 %v648
        %v685 = vunpack.c.l.b16 %v649
        %v686 = vpack.c.b16 %v671, %v670
        %v687 = vpack.c.b16 %v673, %v672
        %v688 = vpack.c.b16 %v675, %v674
        %v689 = vpack.c.b16 %v677, %v676
        %v690 = vpack.c.b16 %v679, %v678
        %v691 = vpack.c.b16 %v681, %v680
        %v692 = vpack.c.b16 %v683, %v682
        %v693 = vpack.c.b16 %v685, %v684
        %702 = vmatpush.bf16.msra.mxu0 %v693
        %703 = vmatpush.bf16.msra.mxu0 %v692
        %704 = vmatpush.bf16.msra.mxu0 %v691
        %705 = vmatpush.bf16.msra.mxu0 %v690
        %706 = vmatpush.bf16.msra.mxu0 %v689
        %707 = vmatpush.bf16.msra.mxu0 %v688
        %708 = vmatpush.bf16.msra.mxu0 %v687
        %709 = vmatpush.bf16.msra.mxu0 %v686
        %710 = vmatmul.bf16.gmra.mxu0 %v632
        %v711 = vpop.f32.mrf.mxu0
        %v712 = vadd.f32 %v652, %v711
        %v713 = vpop.f32.mrf.mxu0
        %v714 = vadd.f32 %v652, %v713
        %715 = vmatmul.bf16.gmra.mxu0 %v633
        %v716 = vpop.f32.mrf.mxu0
        %v717 = vadd.f32 %v652, %v716
        %v718 = vpop.f32.mrf.mxu0
        %v719 = vadd.f32 %v652, %v718
        %720 = vdwg.mxu0
        %v721 = vmax.f32 %v712, 0.0
        %v722 = vmax.f32 %v714, 0.0
        %v723 = vmax.f32 %v717, 0.0
        %v724 = vmax.f32 %v719, 0.0
        %725 = vst [vmem:[#allocation2 + $0x8] sm:$0xff] %v721
        %726 = vst [vmem:[#allocation2 + $0x10] sm:$0xff] %v722
        %727 = vst [vmem:[#allocation2 + $0x28] sm:$0xff] %v723
        %728 = vst [vmem:[#allocation2 + $0x30] sm:$0xff] %v724
        %s729 = scalar_lea.vmem [#allocation7], 8
        %v730 = vld [vmem:[%s729] sm:$0x7f]
        %v731 = vld [vmem:[#allocation2] sm:$0xff]
        %v732 = vld [vmem:[#allocation2 + $0x8] sm:$0xff]
        %v733 = vld [vmem:[#allocation2 + $0x10] sm:$0xff]
        %v734 = vld [vmem:[#allocation2 + $0x18] sm:$0xff]
        %v735 = vperm.slane %v730, 0
        %v736 = vmul.f32 %v731, %v735
        %v737 = vmul.f32 %v732, %v735
        %v738 = vmul.f32 %v733, %v735
        %v739 = vperm.slane %v730, 1
        %v740 = vmul.f32 %v731, %v739
        %v741 = vmul.f32 %v732, %v739
        %v742 = vmul.f32 %v733, %v739
        %v746 = vrot.slane %v740, 1
        %v747 = vrot.slane %v741, 1
        %v748 = vsel %vm414, %v746, %v747
        %v749 = vrot.slane %v742, 1
        %v750 = vsel %vm414, %v747, %v749
        %v754 = vadd.f32 %v736, %v748
        %v755 = vadd.f32 %v737, %v750
        %v756 = vadd.f32 %v738, %v749
        %v757 = vperm.slane %v730, 2
        %v758 = vmul.f32 %v732, %v757
        %v759 = vmul.f32 %v733, %v757
        %v762 = vrot.slane %v758, 2
        %v763 = vrot.slane %v759, 2
        %v764 = vsel %vm433, %v762, %v763
        %v768 = vadd.f32 %v754, %v762
        %v769 = vadd.f32 %v755, %v764
        %v770 = vadd.f32 %v756, %v763
        %v771 = vperm.slane %v730, 3
        %v772 = vmul.f32 %v732, %v771
        %v773 = vmul.f32 %v733, %v771
        %v774 = vmul.f32 %v734, %v771
        %v778 = vrot.slane %v772, 3
        %v779 = vrot.slane %v773, 3
        %v780 = vsel %vm450, %v778, %v779
        %v781 = vrot.slane %v774, 3
        %v782 = vsel %vm450, %v779, %v781
        %v786 = vadd.f32 %v768, %v778
        %v787 = vadd.f32 %v769, %v780
        %v788 = vadd.f32 %v770, %v782
        %v789 = vperm.slane %v730, 4
        %v790 = vmul.f32 %v732, %v789
        %v791 = vmul.f32 %v733, %v789
        %v792 = vmul.f32 %v734, %v789
        %v796 = vrot.slane %v790, 4
        %v797 = vrot.slane %v791, 4
        %v798 = vsel %vm467, %v796, %v797
        %v799 = vrot.slane %v792, 4
        %v800 = vsel %vm467, %v797, %v799
        %v804 = vadd.f32 %v786, %v796
        %v805 = vadd.f32 %v787, %v798
        %v806 = vadd.f32 %v788, %v800
        %807 = vst [vmem:[#allocation3 - $0x6] sm:$0xc0] %v804
        %808 = vst [vmem:[#allocation3 + $0x2] sm:$0xff] %v805
        %809 = vst [vmem:[#allocation3 + $0xa] sm:$0x3f] %v806
        %v810 = vld [vmem:[#allocation2 + $0x20] sm:$0xff]
        %v811 = vld [vmem:[#allocation2 + $0x28] sm:$0xff]
        %v812 = vld [vmem:[#allocation2 + $0x30] sm:$0xff]
        %v813 = vld [vmem:[#allocation2 + $0x38] sm:$0xff]
        %v814 = vmul.f32 %v810, %v735
        %v815 = vmul.f32 %v811, %v735
        %v816 = vmul.f32 %v812, %v735
        %v817 = vmul.f32 %v810, %v739
        %v818 = vmul.f32 %v811, %v739
        %v819 = vmul.f32 %v812, %v739
        %v823 = vrot.slane %v817, 1
        %v824 = vrot.slane %v818, 1
        %v825 = vsel %vm414, %v823, %v824
        %v826 = vrot.slane %v819, 1
        %v827 = vsel %vm414, %v824, %v826
        %v831 = vadd.f32 %v814, %v825
        %v832 = vadd.f32 %v815, %v827
        %v833 = vadd.f32 %v816, %v826
        %v834 = vmul.f32 %v811, %v757
        %v835 = vmul.f32 %v812, %v757
        %v838 = vrot.slane %v834, 2
        %v839 = vrot.slane %v835, 2
        %v840 = vsel %vm433, %v838, %v839
        %v844 = vadd.f32 %v831, %v838
        %v845 = vadd.f32 %v832, %v840
        %v846 = vadd.f32 %v833, %v839
        %v847 = vmul.f32 %v811, %v771
        %v848 = vmul.f32 %v812, %v771
        %v849 = vmul.f32 %v813, %v771
        %v853 = vrot.slane %v847, 3
        %v854 = vrot.slane %v848, 3
        %v855 = vsel %vm450, %v853, %v854
        %v856 = vrot.slane %v849, 3
        %v857 = vsel %vm450, %v854, %v856
        %v861 = vadd.f32 %v844, %v853
        %v862 = vadd.f32 %v845, %v855
        %v863 = vadd.f32 %v846, %v857
        %v864 = vmul.f32 %v811, %v789
        %v865 = vmul.f32 %v812, %v789
        %v866 = vmul.f32 %v813, %v789
        %v870 = vrot.slane %v864, 4
        %v871 = vrot.slane %v865, 4
        %v872 = vsel %vm467, %v870, %v871
        %v873 = vrot.slane %v866, 4
        %v874 = vsel %vm467, %v871, %v873
        %v878 = vadd.f32 %v861, %v870
        %v879 = vadd.f32 %v862, %v872
        %v880 = vadd.f32 %v863, %v874
        %881 = vst [vmem:[#allocation3 + $0xa] sm:$0xc0] %v878
        %882 = vst [vmem:[#allocation3 + $0x12] sm:$0xff] %v879
        %883 = vst [vmem:[#allocation3 + $0x1a] sm:$0x3f] %v880
        %v884 = vld [vmem:[#allocation3] sm:$0xff]
        %v885 = vld [vmem:[#allocation3 + $0x8] sm:$0xff]
        %v886 = vld [vmem:[#allocation3 + $0x10] sm:$0xff]
        %v887 = vld [vmem:[#allocation3 + $0x18] sm:$0xff]
        %v888 = vpack.c.bf16 %v885, %v884
        %v889 = vpack.c.bf16 %v887, %v886
        %s890 = scalar_lea.vmem [#allocation9], 64
        %v891 = vld [vmem:[%s890] sm:$0xf]
        %v892 = vld [vmem:[%s890 + $0x4] sm:$0xf]
        %v893 = vld [vmem:[%s890 + $0x8] sm:$0xf]
        %v894 = vld [vmem:[%s890 + $0xc] sm:$0xf]
        %v895 = vld [vmem:[%s890 + $0x10] sm:$0xf]
        %v896 = vld [vmem:[%s890 + $0x14] sm:$0xf]
        %v897 = vld [vmem:[%s890 + $0x18] sm:$0xf]
        %v898 = vld [vmem:[%s890 + $0x1c] sm:$0xf]
        %v899 = vld [vmem:[%s890 + $0x20] sm:$0xf]
        %v900 = vld [vmem:[%s890 + $0x24] sm:$0xf]
        %v901 = vld [vmem:[%s890 + $0x28] sm:$0xf]
        %v902 = vld [vmem:[%s890 + $0x2c] sm:$0xf]
        %v903 = vld [vmem:[%s890 + $0x30] sm:$0xf]
        %v904 = vld [vmem:[%s890 + $0x34] sm:$0xf]
        %v905 = vld [vmem:[%s890 + $0x38] sm:$0xf]
        %v906 = vld [vmem:[%s890 + $0x3c] sm:$0xf]
        %s907 = scalar_lea.vmem [#allocation10], 1
        %v908 = vld [vmem:[%s907] sm:$0x1]
        %v910 = vperm.slane %v908, 0
        %v928 = vunpack.c.l.b16 %v891
        %v929 = vunpack.c.l.b16 %v892
        %v930 = vunpack.c.l.b16 %v893
        %v931 = vunpack.c.l.b16 %v894
        %v932 = vunpack.c.l.b16 %v895
        %v933 = vunpack.c.l.b16 %v896
        %v934 = vunpack.c.l.b16 %v897
        %v935 = vunpack.c.l.b16 %v898
        %v936 = vunpack.c.l.b16 %v899
        %v937 = vunpack.c.l.b16 %v900
        %v938 = vunpack.c.l.b16 %v901
        %v939 = vunpack.c.l.b16 %v902
        %v940 = vunpack.c.l.b16 %v903
        %v941 = vunpack.c.l.b16 %v904
        %v942 = vunpack.c.l.b16 %v905
        %v943 = vunpack.c.l.b16 %v906
        %v944 = vpack.c.b16 %v929, %v928
        %v945 = vpack.c.b16 %v931, %v930
        %v946 = vpack.c.b16 %v933, %v932
        %v947 = vpack.c.b16 %v935, %v934
        %v948 = vpack.c.b16 %v937, %v936
        %v949 = vpack.c.b16 %v939, %v938
        %v950 = vpack.c.b16 %v941, %v940
        %v951 = vpack.c.b16 %v943, %v942
        %960 = vmatpush.bf16.msra.mxu0 %v951
        %961 = vmatpush.bf16.msra.mxu0 %v950
        %962 = vmatpush.bf16.msra.mxu0 %v949
        %963 = vmatpush.bf16.msra.mxu0 %v948
        %964 = vmatpush.bf16.msra.mxu0 %v947
        %965 = vmatpush.bf16.msra.mxu0 %v946
        %966 = vmatpush.bf16.msra.mxu0 %v945
        %967 = vmatpush.bf16.msra.mxu0 %v944
        %968 = vmatmul.bf16.gmra.mxu0 %v888
        %v969 = vpop.f32.mrf.mxu0
        %v970 = vadd.f32 %v910, %v969
        %v971 = vpop.f32.mrf.mxu0
        %v972 = vadd.f32 %v910, %v971
        %973 = vmatmul.bf16.gmra.mxu0 %v889
        %v974 = vpop.f32.mrf.mxu0
        %v975 = vadd.f32 %v910, %v974
        %v976 = vpop.f32.mrf.mxu0
        %v977 = vadd.f32 %v910, %v976
        %978 = vdwg.mxu0
        %v979 = vpack.c.bf16 %v722, %v721
        %v980 = vpack.c.bf16 %v724, %v723
        %s981 = scalar_lea.vmem [#allocation12], 64
        %v982 = vld [vmem:[%s981] sm:$0xf]
        %v983 = vld [vmem:[%s981 + $0x4] sm:$0xf]
        %v984 = vld [vmem:[%s981 + $0x8] sm:$0xf]
        %v985 = vld [vmem:[%s981 + $0xc] sm:$0xf]
        %v986 = vld [vmem:[%s981 + $0x10] sm:$0xf]
        %v987 = vld [vmem:[%s981 + $0x14] sm:$0xf]
        %v988 = vld [vmem:[%s981 + $0x18] sm:$0xf]
        %v989 = vld [vmem:[%s981 + $0x1c] sm:$0xf]
        %v990 = vld [vmem:[%s981 + $0x20] sm:$0xf]
        %v991 = vld [vmem:[%s981 + $0x24] sm:$0xf]
        %v992 = vld [vmem:[%s981 + $0x28] sm:$0xf]
        %v993 = vld [vmem:[%s981 + $0x2c] sm:$0xf]
        %v994 = vld [vmem:[%s981 + $0x30] sm:$0xf]
        %v995 = vld [vmem:[%s981 + $0x34] sm:$0xf]
        %v996 = vld [vmem:[%s981 + $0x38] sm:$0xf]
        %v997 = vld [vmem:[%s981 + $0x3c] sm:$0xf]
        %v1014 = vunpack.c.l.b16 %v982
        %v1015 = vunpack.c.l.b16 %v983
        %v1016 = vunpack.c.l.b16 %v984
        %v1017 = vunpack.c.l.b16 %v985
        %v1018 = vunpack.c.l.b16 %v986
        %v1019 = vunpack.c.l.b16 %v987
        %v1020 = vunpack.c.l.b16 %v988
        %v1021 = vunpack.c.l.b16 %v989
        %v1022 = vunpack.c.l.b16 %v990
        %v1023 = vunpack.c.l.b16 %v991
        %v1024 = vunpack.c.l.b16 %v992
        %v1025 = vunpack.c.l.b16 %v993
        %v1026 = vunpack.c.l.b16 %v994
        %v1027 = vunpack.c.l.b16 %v995
        %v1028 = vunpack.c.l.b16 %v996
        %v1029 = vunpack.c.l.b16 %v997
        %v1030 = vpack.c.b16 %v1015, %v1014
        %v1031 = vpack.c.b16 %v1017, %v1016
        %v1032 = vpack.c.b16 %v1019, %v1018
        %v1033 = vpack.c.b16 %v1021, %v1020
        %v1034 = vpack.c.b16 %v1023, %v1022
        %v1035 = vpack.c.b16 %v1025, %v1024
        %v1036 = vpack.c.b16 %v1027, %v1026
        %v1037 = vpack.c.b16 %v1029, %v1028
        %1046 = vmatpush.bf16.msra.mxu0 %v1037
        %1047 = vmatpush.bf16.msra.mxu0 %v1036
        %1048 = vmatpush.bf16.msra.mxu0 %v1035
        %1049 = vmatpush.bf16.msra.mxu0 %v1034
        %1050 = vmatpush.bf16.msra.mxu0 %v1033
        %1051 = vmatpush.bf16.msra.mxu0 %v1032
        %1052 = vmatpush.bf16.msra.mxu0 %v1031
        %1053 = vmatpush.bf16.msra.mxu0 %v1030
        %1054 = vmatmul.bf16.gmra.mxu0 %v979
        %v1055 = vpop.f32.mrf.mxu0
        %v1056 = vadd.f32 0.0, %v1055
        %v1057 = vpop.f32.mrf.mxu0
        %v1058 = vadd.f32 0.0, %v1057
        %1059 = vmatmul.bf16.gmra.mxu0 %v980
        %v1060 = vpop.f32.mrf.mxu0
        %v1061 = vadd.f32 0.0, %v1060
        %v1062 = vpop.f32.mrf.mxu0
        %v1063 = vadd.f32 0.0, %v1062
        %1064 = vdwg.mxu0
        %v1065 = vadd.f32 %v970, %v1056
        %v1066 = vadd.f32 %v972, %v1058
        %v1067 = vadd.f32 %v975, %v1061
        %v1068 = vadd.f32 %v977, %v1063
        %v1069 = vmax.f32 %v1065, 0.0
        %v1070 = vmax.f32 %v1066, 0.0
        %v1071 = vmax.f32 %v1067, 0.0
        %v1072 = vmax.f32 %v1068, 0.0
        %1073 = vst [vmem:[#allocation2 + $0x8] sm:$0xff] %v1069
        %1074 = vst [vmem:[#allocation2 + $0x10] sm:$0xff] %v1070
        %1075 = vst [vmem:[#allocation2 + $0x28] sm:$0xff] %v1071
        %1076 = vst [vmem:[#allocation2 + $0x30] sm:$0xff] %v1072
        %s1077 = scalar_lea.vmem [#allocation7], 16
        %v1078 = vld [vmem:[%s1077] sm:$0x7f]
        %v1079 = vld [vmem:[#allocation2] sm:$0xff]
        %v1080 = vld [vmem:[#allocation2 + $0x8] sm:$0xff]
        %v1081 = vld [vmem:[#allocation2 + $0x10] sm:$0xff]
        %v1082 = vld [vmem:[#allocation2 + $0x18] sm:$0xff]
        %v1083 = vperm.slane %v1078, 0
        %v1084 = vmul.f32 %v1079, %v1083
        %v1085 = vmul.f32 %v1080, %v1083
        %v1086 = vmul.f32 %v1081, %v1083
        %v1087 = vperm.slane %v1078, 1
        %v1088 = vmul.f32 %v1079, %v1087
        %v1089 = vmul.f32 %v1080, %v1087
        %v1090 = vmul.f32 %v1081, %v1087
        %v1094 = vrot.slane %v1088, 1
        %v1095 = vrot.slane %v1089, 1
        %v1096 = vsel %vm414, %v1094, %v1095
        %v1097 = vrot.slane %v1090, 1
        %v1098 = vsel %vm414, %v1095, %v1097
        %v1102 = vadd.f32 %v1084, %v1096
        %v1103 = vadd.f32 %v1085, %v1098
        %v1104 = vadd.f32 %v1086, %v1097
        %v1105 = vperm.slane %v1078, 2
        %v1106 = vmul.f32 %v1079, %v1105
        %v1107 = vmul.f32 %v1080, %v1105
        %v1108 = vmul.f32 %v1081, %v1105
        %v1112 = vrot.slane %v1106, 2
        %v1113 = vrot.slane %v1107, 2
        %v1114 = vsel %vm433, %v1112, %v1113
        %v1115 = vrot.slane %v1108, 2
        %v1116 = vsel %vm433, %v1113, %v1115
        %v1120 = vadd.f32 %v1102, %v1114
        %v1121 = vadd.f32 %v1103, %v1116
        %v1122 = vadd.f32 %v1104, %v1115
        %v1123 = vperm.slane %v1078, 3
        %v1124 = vmul.f32 %v1080, %v1123
        %v1125 = vmul.f32 %v1081, %v1123
        %v1128 = vrot.slane %v1124, 3
        %v1129 = vrot.slane %v1125, 3
        %v1130 = vsel %vm450, %v1128, %v1129
        %v1134 = vadd.f32 %v1120, %v1128
        %v1135 = vadd.f32 %v1121, %v1130
        %v1136 = vadd.f32 %v1122, %v1129
        %v1137 = vperm.slane %v1078, 4
        %v1138 = vmul.f32 %v1080, %v1137
        %v1139 = vmul.f32 %v1081, %v1137
        %v1140 = vmul.f32 %v1082, %v1137
        %v1144 = vrot.slane %v1138, 4
        %v1145 = vrot.slane %v1139, 4
        %v1146 = vsel %vm467, %v1144, %v1145
        %v1147 = vrot.slane %v1140, 4
        %v1148 = vsel %vm467, %v1145, %v1147
        %v1152 = vadd.f32 %v1134, %v1144
        %v1153 = vadd.f32 %v1135, %v1146
        %v1154 = vadd.f32 %v1136, %v1148
        %v1155 = vperm.slane %v1078, 5
        %v1156 = vmul.f32 %v1080, %v1155
        %v1157 = vmul.f32 %v1081, %v1155
        %v1158 = vmul.f32 %v1082, %v1155
        %v1162 = vrot.slane %v1156, 5
        %v1163 = vrot.slane %v1157, 5
        %v1164 = vsel %vm486, %v1162, %v1163
        %v1165 = vrot.slane %v1158, 5
        %v1166 = vsel %vm486, %v1163, %v1165
        %v1170 = vadd.f32 %v1152, %v1162
        %v1171 = vadd.f32 %v1153, %v1164
        %v1172 = vadd.f32 %v1154, %v1166
        %v1173 = vperm.slane %v1078, 6
        %v1174 = vmul.f32 %v1080, %v1173
        %v1175 = vmul.f32 %v1081, %v1173
        %v1176 = vmul.f32 %v1082, %v1173
        %v1180 = vrot.slane %v1174, 6
        %v1181 = vrot.slane %v1175, 6
        %v1182 = vsel %vm505, %v1180, %v1181
        %v1183 = vrot.slane %v1176, 6
        %v1184 = vsel %vm505, %v1181, %v1183
        %v1188 = vadd.f32 %v1170, %v1180
        %v1189 = vadd.f32 %v1171, %v1182
        %v1190 = vadd.f32 %v1172, %v1184
        %1191 = vst [vmem:[#allocation3 - $0x5] sm:$0xe0] %v1188
        %1192 = vst [vmem:[#allocation3 + $0x3] sm:$0xff] %v1189
        %1193 = vst [vmem:[#allocation3 + $0xb] sm:$0x1f] %v1190
        %v1194 = vld [vmem:[#allocation2 + $0x20] sm:$0xff]
        %v1195 = vld [vmem:[#allocation2 + $0x28] sm:$0xff]
        %v1196 = vld [vmem:[#allocation2 + $0x30] sm:$0xff]
        %v1197 = vld [vmem:[#allocation2 + $0x38] sm:$0xff]
        %v1198 = vmul.f32 %v1194, %v1083
        %v1199 = vmul.f32 %v1195, %v1083
        %v1200 = vmul.f32 %v1196, %v1083
        %v1201 = vmul.f32 %v1194, %v1087
        %v1202 = vmul.f32 %v1195, %v1087
        %v1203 = vmul.f32 %v1196, %v1087
        %v1207 = vrot.slane %v1201, 1
        %v1208 = vrot.slane %v1202, 1
        %v1209 = vsel %vm414, %v1207, %v1208
        %v1210 = vrot.slane %v1203, 1
        %v1211 = vsel %vm414, %v1208, %v1210
        %v1215 = vadd.f32 %v1198, %v1209
        %v1216 = vadd.f32 %v1199, %v1211
        %v1217 = vadd.f32 %v1200, %v1210
        %v1218 = vmul.f32 %v1194, %v1105
        %v1219 = vmul.f32 %v1195, %v1105
        %v1220 = vmul.f32 %v1196, %v1105
        %v1224 = vrot.slane %v1218, 2
        %v1225 = vrot.slane %v1219, 2
        %v1226 = vsel %vm433, %v1224, %v1225
        %v1227 = vrot.slane %v1220, 2
        %v1228 = vsel %vm433, %v1225, %v1227
        %v1232 = vadd.f32 %v1215, %v1226
        %v1233 = vadd.f32 %v1216, %v1228
        %v1234 = vadd.f32 %v1217, %v1227
        %v1235 = vmul.f32 %v1195, %v1123
        %v1236 = vmul.f32 %v1196, %v1123
        %v1239 = vrot.slane %v1235, 3
        %v1240 = vrot.slane %v1236, 3
        %v1241 = vsel %vm450, %v1239, %v1240
        %v1245 = vadd.f32 %v1232, %v1239
        %v1246 = vadd.f32 %v1233, %v1241
        %v1247 = vadd.f32 %v1234, %v1240
        %v1248 = vmul.f32 %v1195, %v1137
        %v1249 = vmul.f32 %v1196, %v1137
        %v1250 = vmul.f32 %v1197, %v1137
        %v1254 = vrot.slane %v1248, 4
        %v1255 = vrot.slane %v1249, 4
        %v1256 = vsel %vm467, %v1254, %v1255
        %v1257 = vrot.slane %v1250, 4
        %v1258 = vsel %vm467, %v1255, %v1257
        %v1262 = vadd.f32 %v1245, %v1254
        %v1263 = vadd.f32 %v1246, %v1256
        %v1264 = vadd.f32 %v1247, %v1258
        %v1265 = vmul.f32 %v1195, %v1155
        %v1266 = vmul.f32 %v1196, %v1155
        %v1267 = vmul.f32 %v1197, %v1155
        %v1271 = vrot.slane %v1265, 5
        %v1272 = vrot.slane %v1266, 5
        %v1273 = vsel %vm486, %v1271, %v1272
        %v1274 = vrot.slane %v1267, 5
        %v1275 = vsel %vm486, %v1272, %v1274
        %v1279 = vadd.f32 %v1262, %v1271
        %v1280 = vadd.f32 %v1263, %v1273
        %v1281 = vadd.f32 %v1264, %v1275
        %v1282 = vmul.f32 %v1195, %v1173
        %v1283 = vmul.f32 %v1196, %v1173
        %v1284 = vmul.f32 %v1197, %v1173
        %v1288 = vrot.slane %v1282, 6
        %v1289 = vrot.slane %v1283, 6
        %v1290 = vsel %vm505, %v1288, %v1289
        %v1291 = vrot.slane %v1284, 6
        %v1292 = vsel %vm505, %v1289, %v1291
        %v1296 = vadd.f32 %v1279, %v1288
        %v1297 = vadd.f32 %v1280, %v1290
        %v1298 = vadd.f32 %v1281, %v1292
        %1299 = vst [vmem:[#allocation3 + $0xb] sm:$0xe0] %v1296
        %1300 = vst [vmem:[#allocation3 + $0x13] sm:$0xff] %v1297
        %1301 = vst [vmem:[#allocation3 + $0x1b] sm:$0x1f] %v1298
        %v1302 = vld [vmem:[#allocation3] sm:$0xff]
        %v1303 = vld [vmem:[#allocation3 + $0x8] sm:$0xff]
        %v1304 = vld [vmem:[#allocation3 + $0x10] sm:$0xff]
        %v1305 = vld [vmem:[#allocation3 + $0x18] sm:$0xff]
        %v1306 = vpack.c.bf16 %v1303, %v1302
        %v1307 = vpack.c.bf16 %v1305, %v1304
        %s1308 = scalar_lea.vmem [#allocation9], 128
        %v1309 = vld [vmem:[%s1308] sm:$0xf]
        %v1310 = vld [vmem:[%s1308 + $0x4] sm:$0xf]
        %v1311 = vld [vmem:[%s1308 + $0x8] sm:$0xf]
        %v1312 = vld [vmem:[%s1308 + $0xc] sm:$0xf]
        %v1313 = vld [vmem:[%s1308 + $0x10] sm:$0xf]
        %v1314 = vld [vmem:[%s1308 + $0x14] sm:$0xf]
        %v1315 = vld [vmem:[%s1308 + $0x18] sm:$0xf]
        %v1316 = vld [vmem:[%s1308 + $0x1c] sm:$0xf]
        %v1317 = vld [vmem:[%s1308 + $0x20] sm:$0xf]
        %v1318 = vld [vmem:[%s1308 + $0x24] sm:$0xf]
        %v1319 = vld [vmem:[%s1308 + $0x28] sm:$0xf]
        %v1320 = vld [vmem:[%s1308 + $0x2c] sm:$0xf]
        %v1321 = vld [vmem:[%s1308 + $0x30] sm:$0xf]
        %v1322 = vld [vmem:[%s1308 + $0x34] sm:$0xf]
        %v1323 = vld [vmem:[%s1308 + $0x38] sm:$0xf]
        %v1324 = vld [vmem:[%s1308 + $0x3c] sm:$0xf]
        %s1325 = scalar_lea.vmem [#allocation10], 2
        %v1326 = vld [vmem:[%s1325] sm:$0x1]
        %v1328 = vperm.slane %v1326, 0
        %v1346 = vunpack.c.l.b16 %v1309
        %v1347 = vunpack.c.l.b16 %v1310
        %v1348 = vunpack.c.l.b16 %v1311
        %v1349 = vunpack.c.l.b16 %v1312
        %v1350 = vunpack.c.l.b16 %v1313
        %v1351 = vunpack.c.l.b16 %v1314
        %v1352 = vunpack.c.l.b16 %v1315
        %v1353 = vunpack.c.l.b16 %v1316
        %v1354 = vunpack.c.l.b16 %v1317
        %v1355 = vunpack.c.l.b16 %v1318
        %v1356 = vunpack.c.l.b16 %v1319
        %v1357 = vunpack.c.l.b16 %v1320
        %v1358 = vunpack.c.l.b16 %v1321
        %v1359 = vunpack.c.l.b16 %v1322
        %v1360 = vunpack.c.l.b16 %v1323
        %v1361 = vunpack.c.l.b16 %v1324
        %v1362 = vpack.c.b16 %v1347, %v1346
        %v1363 = vpack.c.b16 %v1349, %v1348
        %v1364 = vpack.c.b16 %v1351, %v1350
        %v1365 = vpack.c.b16 %v1353, %v1352
        %v1366 = vpack.c.b16 %v1355, %v1354
        %v1367 = vpack.c.b16 %v1357, %v1356
        %v1368 = vpack.c.b16 %v1359, %v1358
        %v1369 = vpack.c.b16 %v1361, %v1360
        %1378 = vmatpush.bf16.msra.mxu0 %v1369
        %1379 = vmatpush.bf16.msra.mxu0 %v1368
        %1380 = vmatpush.bf16.msra.mxu0 %v1367
        %1381 = vmatpush.bf16.msra.mxu0 %v1366
        %1382 = vmatpush.bf16.msra.mxu0 %v1365
        %1383 = vmatpush.bf16.msra.mxu0 %v1364
        %1384 = vmatpush.bf16.msra.mxu0 %v1363
        %1385 = vmatpush.bf16.msra.mxu0 %v1362
        %1386 = vmatmul.bf16.gmra.mxu0 %v1306
        %v1387 = vpop.f32.mrf.mxu0
        %v1388 = vadd.f32 %v1328, %v1387
        %v1389 = vpop.f32.mrf.mxu0
        %v1390 = vadd.f32 %v1328, %v1389
        %1391 = vmatmul.bf16.gmra.mxu0 %v1307
        %v1392 = vpop.f32.mrf.mxu0
        %v1393 = vadd.f32 %v1328, %v1392
        %v1394 = vpop.f32.mrf.mxu0
        %v1395 = vadd.f32 %v1328, %v1394
        %1396 = vdwg.mxu0
        %v1397 = vpack.c.bf16 %v1070, %v1069
        %v1398 = vpack.c.bf16 %v1072, %v1071
        %s1399 = scalar_lea.vmem [#allocation12], 128
        %v1400 = vld [vmem:[%s1399] sm:$0xf]
        %v1401 = vld [vmem:[%s1399 + $0x4] sm:$0xf]
        %v1402 = vld [vmem:[%s1399 + $0x8] sm:$0xf]
        %v1403 = vld [vmem:[%s1399 + $0xc] sm:$0xf]
        %v1404 = vld [vmem:[%s1399 + $0x10] sm:$0xf]
        %v1405 = vld [vmem:[%s1399 + $0x14] sm:$0xf]
        %v1406 = vld [vmem:[%s1399 + $0x18] sm:$0xf]
        %v1407 = vld [vmem:[%s1399 + $0x1c] sm:$0xf]
        %v1408 = vld [vmem:[%s1399 + $0x20] sm:$0xf]
        %v1409 = vld [vmem:[%s1399 + $0x24] sm:$0xf]
        %v1410 = vld [vmem:[%s1399 + $0x28] sm:$0xf]
        %v1411 = vld [vmem:[%s1399 + $0x2c] sm:$0xf]
        %v1412 = vld [vmem:[%s1399 + $0x30] sm:$0xf]
        %v1413 = vld [vmem:[%s1399 + $0x34] sm:$0xf]
        %v1414 = vld [vmem:[%s1399 + $0x38] sm:$0xf]
        %v1415 = vld [vmem:[%s1399 + $0x3c] sm:$0xf]
        %v1432 = vunpack.c.l.b16 %v1400
        %v1433 = vunpack.c.l.b16 %v1401
        %v1434 = vunpack.c.l.b16 %v1402
        %v1435 = vunpack.c.l.b16 %v1403
        %v1436 = vunpack.c.l.b16 %v1404
        %v1437 = vunpack.c.l.b16 %v1405
        %v1438 = vunpack.c.l.b16 %v1406
        %v1439 = vunpack.c.l.b16 %v1407
        %v1440 = vunpack.c.l.b16 %v1408
        %v1441 = vunpack.c.l.b16 %v1409
        %v1442 = vunpack.c.l.b16 %v1410
        %v1443 = vunpack.c.l.b16 %v1411
        %v1444 = vunpack.c.l.b16 %v1412
        %v1445 = vunpack.c.l.b16 %v1413
        %v1446 = vunpack.c.l.b16 %v1414
        %v1447 = vunpack.c.l.b16 %v1415
        %v1448 = vpack.c.b16 %v1433, %v1432
        %v1449 = vpack.c.b16 %v1435, %v1434
        %v1450 = vpack.c.b16 %v1437, %v1436
        %v1451 = vpack.c.b16 %v1439, %v1438
        %v1452 = vpack.c.b16 %v1441, %v1440
        %v1453 = vpack.c.b16 %v1443, %v1442
        %v1454 = vpack.c.b16 %v1445, %v1444
        %v1455 = vpack.c.b16 %v1447, %v1446
        %1464 = vmatpush.bf16.msra.mxu0 %v1455
        %1465 = vmatpush.bf16.msra.mxu0 %v1454
        %1466 = vmatpush.bf16.msra.mxu0 %v1453
        %1467 = vmatpush.bf16.msra.mxu0 %v1452
        %1468 = vmatpush.bf16.msra.mxu0 %v1451
        %1469 = vmatpush.bf16.msra.mxu0 %v1450
        %1470 = vmatpush.bf16.msra.mxu0 %v1449
        %1471 = vmatpush.bf16.msra.mxu0 %v1448
        %1472 = vmatmul.bf16.gmra.mxu0 %v1397
        %v1473 = vpop.f32.mrf.mxu0
        %v1474 = vadd.f32 0.0, %v1473
        %v1475 = vpop.f32.mrf.mxu0
        %v1476 = vadd.f32 0.0, %v1475
        %1477 = vmatmul.bf16.gmra.mxu0 %v1398
        %v1478 = vpop.f32.mrf.mxu0
        %v1479 = vadd.f32 0.0, %v1478
        %v1480 = vpop.f32.mrf.mxu0
        %v1481 = vadd.f32 0.0, %v1480
        %1482 = vdwg.mxu0
        %v1483 = vadd.f32 %v1388, %v1474
        %v1484 = vadd.f32 %v1390, %v1476
        %v1485 = vadd.f32 %v1393, %v1479
        %v1486 = vadd.f32 %v1395, %v1481
        %v1487 = vmax.f32 %v1483, 0.0
        %v1488 = vmax.f32 %v1484, 0.0
        %v1489 = vmax.f32 %v1485, 0.0
        %v1490 = vmax.f32 %v1486, 0.0
        %v1491 = vpack.c.bf16 %v1488, %v1487
        %v1492 = vpack.c.bf16 %v1490, %v1489
        %v1493 = vld [vmem:[#allocation13] sm:$0xf]
        %v1494 = vld [vmem:[#allocation13 + $0x4] sm:$0xf]
        %v1495 = vld [vmem:[#allocation13 + $0x8] sm:$0xf]
        %v1496 = vld [vmem:[#allocation13 + $0xc] sm:$0xf]
        %v1497 = vld [vmem:[#allocation13 + $0x10] sm:$0xf]
        %v1498 = vld [vmem:[#allocation13 + $0x14] sm:$0xf]
        %v1499 = vld [vmem:[#allocation13 + $0x18] sm:$0xf]
        %v1500 = vld [vmem:[#allocation13 + $0x1c] sm:$0xf]
        %v1501 = vld [vmem:[#allocation13 + $0x20] sm:$0xf]
        %v1502 = vld [vmem:[#allocation13 + $0x24] sm:$0xf]
        %v1503 = vld [vmem:[#allocation13 + $0x28] sm:$0xf]
        %v1504 = vld [vmem:[#allocation13 + $0x2c] sm:$0xf]
        %v1505 = vld [vmem:[#allocation13 + $0x30] sm:$0xf]
        %v1506 = vld [vmem:[#allocation13 + $0x34] sm:$0xf]
        %v1507 = vld [vmem:[#allocation13 + $0x38] sm:$0xf]
        %v1508 = vld [vmem:[#allocation13 + $0x3c] sm:$0xf]
        %v1509 = vld [vmem:[%s6] sm:$0x1]
        %v1511 = vperm.slane %v1509, 0
        %v1529 = vunpack.c.l.b16 %v1493
        %v1530 = vunpack.c.l.b16 %v1494
        %v1531 = vunpack.c.l.b16 %v1495
        %v1532 = vunpack.c.l.b16 %v1496
        %v1533 = vunpack.c.l.b16 %v1497
        %v1534 = vunpack.c.l.b16 %v1498
        %v1535 = vunpack.c.l.b16 %v1499
        %v1536 = vunpack.c.l.b16 %v1500
        %v1537 = vunpack.c.l.b16 %v1501
        %v1538 = vunpack.c.l.b16 %v1502
        %v1539 = vunpack.c.l.b16 %v1503
        %v1540 = vunpack.c.l.b16 %v1504
        %v1541 = vunpack.c.l.b16 %v1505
        %v1542 = vunpack.c.l.b16 %v1506
        %v1543 = vunpack.c.l.b16 %v1507
        %v1544 = vunpack.c.l.b16 %v1508
        %v1545 = vpack.c.b16 %v1530, %v1529
        %v1546 = vpack.c.b16 %v1532, %v1531
        %v1547 = vpack.c.b16 %v1534, %v1533
        %v1548 = vpack.c.b16 %v1536, %v1535
        %v1549 = vpack.c.b16 %v1538, %v1537
        %v1550 = vpack.c.b16 %v1540, %v1539
        %v1551 = vpack.c.b16 %v1542, %v1541
        %v1552 = vpack.c.b16 %v1544, %v1543
        %1561 = vmatpush.bf16.msra.mxu0 %v1552
        %1562 = vmatpush.bf16.msra.mxu0 %v1551
        %1563 = vmatpush.bf16.msra.mxu0 %v1550
        %1564 = vmatpush.bf16.msra.mxu0 %v1549
        %1565 = vmatpush.bf16.msra.mxu0 %v1548
        %1566 = vmatpush.bf16.msra.mxu0 %v1547
        %1567 = vmatpush.bf16.msra.mxu0 %v1546
        %1568 = vmatpush.bf16.msra.mxu0 %v1545
        %1569 = vmatmul.bf16.gmra.mxu0 %v1491
        %v1570 = vpop.f32.mrf.mxu0
        %v1571 = vadd.f32 %v1511, %v1570
        %v1572 = vpop.f32.mrf.mxu0
        %v1573 = vadd.f32 %v1511, %v1572
        %1574 = vmatmul.bf16.gmra.mxu0 %v1492
        %v1575 = vpop.f32.mrf.mxu0
        %v1576 = vadd.f32 %v1511, %v1575
        %v1577 = vpop.f32.mrf.mxu0
        %v1578 = vadd.f32 %v1511, %v1577
        %1579 = vdwg.mxu0
        %1580 = vmax.xlane.f32.xlu0 %v1571
        %v1581 = vpop.xlane.xlu0 %1580
        %1582 = vmax.xlane.f32.xlu0 %v1573
        %v1583 = vpop.xlane.xlu0 %1582
        %1584 = vmax.xlane.f32.xlu0 %v1576
        %v1585 = vpop.xlane.xlu0 %1584
        %1586 = vmax.xlane.f32.xlu0 %v1578
        %v1587 = vpop.xlane.xlu0 %1586
        %v1588 = vsub.f32 %v1571, %v1581
        %v1589 = vsub.f32 %v1573, %v1583
        %v1590 = vsub.f32 %v1576, %v1585
        %v1591 = vsub.f32 %v1578, %v1587
        %v1592 = vmul.f32 %v1588, 1.442695
        %v1593 = vpow.pop %v1592
        %v1594 = vmul.f32 %v1589, 1.442695
        %v1595 = vpow.pop %v1594
        %v1596 = vmul.f32 %v1590, 1.442695
        %v1597 = vpow.pop %v1596
        %v1598 = vmul.f32 %v1591, 1.442695
        %v1599 = vpow.pop %v1598
        %1600 = vadd.xlane.f32.xlu0 %v1593
        %v1601 = vpop.xlane.xlu0 %1600
        %1602 = vadd.xlane.f32.xlu0 %v1595
        %v1603 = vpop.xlane.xlu0 %1602
        %1604 = vadd.xlane.f32.xlu0 %v1597
        %v1605 = vpop.xlane.xlu0 %1604
        %1606 = vadd.xlane.f32.xlu0 %v1599
        %v1607 = vpop.xlane.xlu0 %1606
        %v1608 = vlog2.pop %v1601
        %v1609 = vmul.f32 %v1608, 0.6931472
        %v1610 = vlog2.pop %v1603
        %v1611 = vmul.f32 %v1610, 0.6931472
        %v1612 = vlog2.pop %v1605
        %v1613 = vmul.f32 %v1612, 0.6931472
        %v1614 = vlog2.pop %v1607
        %v1615 = vmul.f32 %v1614, 0.6931472
        %v1616 = vsub.f32 %v1588, %v1609
        %v1617 = vsub.f32 %v1589, %v1611
        %v1618 = vsub.f32 %v1590, %v1613
        %v1619 = vsub.f32 %v1591, %v1615
        %1620 = vst [vmem:[%s382] sm:$0xff] %v1616
        %1621 = vst [vmem:[%s382 + $0x8] sm:$0xff] %v1617
        %s1622 = scalar_lea.vmem %s382, 16 [#allocation15]
        %1623 = vst [vmem:[%s1622] sm:$0xff] %v1618
        %1624 = vst [vmem:[%s1622 + $0x8] sm:$0xff] %v1619
        %s1625 = sand.u32 %s187, 1
        %s1626 = scalar_lea.sflag [#allocation6], %s1625
        %s1627 = sand.u32 %s187, 1
        %s1628 = smul.addr %s1627, 32
        %s1629 = scalar_lea.vmem [#allocation15], %s1628
        // Predicated region
        $region73: #{tpu_custom_call.1} parent=47 // pred_check
          %p1630 = pneg %p197
        $region74: #{tpu_custom_call.1} parent=47 // pred_check_branch
          %1632 = sbr.rel (%p1630) target = $region76
        $region75: #{tpu_custom_call.1} parent=47 // pred_region
          %s1633 = smul.u32 2, %s27
          %1635 = vsyncadd %s1626, 0
          %s1636 = smul.addr %s1633, 2
          %s1637 = smul.addr %s1636, 8
          %s1638 = scalar_lea.hbm %s7, %s1637
          %s1639 = sshll.u32 %s1629, 4
          %s1640 = int_to_ptr.vmem [resolvable:$true] %s1639
          %s1641 = sshll.u32 %s1638, 4
          %s1642 = int_to_ptr.hbm [resolvable:$true] %s1641
          %1647 = dma.vmem_to_hbm [thread:$0]  %s1640, 512, %s1642, %s1626, 128, 128, 8
        $region76: #{tpu_custom_call.1} parent=47 // pred_fallthru
          _
      $region48: #{tpu_custom_call.1} parent=5 // pred_fallthru
        _
      %p1648 = scmp.le.s32.totalorder 2, %s22
      // Predicated region
      $region77: #{tpu_custom_call.1} parent=5 // pred_check
        %p1649 = pneg %p1648
      $region78: #{tpu_custom_call.1} parent=5 // pred_check_branch
        %1651 = sbr.rel (%p1649) target = $region80
      $region79: #{tpu_custom_call.1} parent=5 // pred_region
        %s1652 = ssub.s32 %s22, 2
        // Predicated region
        $region81: #{tpu_custom_call.1} parent=79 // pred_check
          %p1653 = pneg %p203
        $region82: #{tpu_custom_call.1} parent=79 // pred_check_branch
          %1655 = sbr.rel (%p1653) target = $region84
        $region83: #{tpu_custom_call.1} parent=79 // pred_region
          %s1656 = sand.u32 %s188, 1
          %s1657 = scalar_lea.sflag [#allocation6], %s1656
          %s1658 = sand.u32 %s188, 1
          %s1659 = smul.addr %s1658, 32
          %s1660 = scalar_lea.vmem [#allocation15], %s1659
          %1662 = dma.done %s1657, 512
        $region84: #{tpu_custom_call.1} parent=79 // pred_fallthru
          _
      $region80: #{tpu_custom_call.1} parent=5 // pred_fallthru
        _
    $region6: #{tpu_custom_call.1} parent=1 // loop_footer
      %s26 = sadd.s32 1, %s22
    $region7: #{tpu_custom_call.1} parent=1 // loop_footer_branch
      %21 = sbr.rel target = $region3
    $region8: #{tpu_custom_call.1} parent=1 // loop_exit
      _
    %1663 = vsyncpa [#allocation5], 1
    %s1664 = scalar_lea.sflag [#allocation5], 1
    %1665 = vsyncpa %s1664, 1
    %1666 = vsyncpa [#allocation8], 1
    %1667 = vsyncpa [#allocation11], 1
    %1668 = vsyncpa [#allocation14], 1
    %1669 = vsyncpa [#allocation6], 1
    %s1670 = scalar_lea.sflag [#allocation6], 1
    %1671 = vsyncpa %s1670, 1

</llo_original>
